<compile_context>
chip_gen: v7x
topology: tpu7x:2x2x1
jax: 0.10.0
libtpu: 0.0.40
codegen_flags: <defaults>
</compile_context>

<pallas_src>
import jax
import jax.numpy as jnp
from jax import lax
from jax.experimental import pallas as pl
from jax.experimental.pallas import tpu as pltpu


def _round_up(a, b):
    return (a + b - 1) // b * b


def _largest_divisor_leq(n, cap):
    cap = max(1, min(n, cap))
    for d in range(cap, 0, -1):
        if n % d == 0:
            return d
    return 1


def _vmem_budget_bytes():
    """Generation-aware VMEM budget (leave headroom for compiler scratch)."""
    try:
        cap = pltpu.get_tpu_info().vmem_capacity_bytes
    except Exception:
        cap = 64 * 2**20          # conservative (v7x-sized) fallback
    return int(cap * 3 // 4)      # ~48 MiB on v7x, ~96 MiB on v5e/v6e


def fold_bn(gamma, beta, mean, var, eps=1e-5):
    scale = gamma / jnp.sqrt(var + eps)
    bias = beta - mean * scale
    return scale, bias


def fold_params(raw):
    """Fold eval-mode BN into the conv weights (bf16) and pack conv2 taps.

    conv2 weights arrive as HWIO (3, 3, width, width); they are packed per kx
    column as (3, 3*width, width) so each dx tap is one K=3*width matmul.
    Folding into bf16 weights applies BN at bf16 precision (intentional).
    """
    w1, s1, b1, w2, s2, b2, w3, s3, b3 = raw
    w1f = (w1 * s1[None, :]).astype(jnp.bfloat16)                   # (Cin, width)
    w2s = w2 * s2.reshape(1, 1, 1, -1)                              # HWIO, scaled
    w2p = jnp.stack(
        [jnp.concatenate([w2s[ky, kx] for ky in range(3)], axis=0)
         for kx in range(3)], axis=0).astype(jnp.bfloat16)          # (3, 3w, w)
    w3f = (w3 * s3[None, :]).astype(jnp.bfloat16)                   # (width, Cout)
    return (w1f, b1.reshape(1, -1).astype(jnp.float32),
            w2p, b2.reshape(1, -1).astype(jnp.float32),
            w3f, b3.reshape(1, -1).astype(jnp.float32))


def bottleneck_pallas(x_nhwc, folded, *, tile_h=None, chunk_h=None):
    """x_nhwc: (N, H, W, Cin) f32/bf16; folded: output of fold_params."""
    N, H, W, Cin = x_nhwc.shape
    w1, b1, w2p, b2, w3, b3 = folded
    width = w1.shape[1]
    Cout = w3.shape[1]
    if Cin != Cout:
        raise ValueError(
            "Bottleneck with downsample=None requires inplanes == planes * "
            f"expansion (got Cin={Cin}, Cout={Cout}).")
    x = x_nhwc.astype(jnp.bfloat16)                # bf16 I/O halves HBM traffic

    # ---- tiling --------------------------------------------------------------
    if tile_h is None:                             # output rows per grid step
        tile_h = _largest_divisor_leq(H, max(1, 2048 // W))
    if H % tile_h != 0:
        raise ValueError(f"tile_h={tile_h} must divide H={H}")
    if chunk_h is None:                            # rows per register chunk
        chunk_h = _largest_divisor_leq(tile_h, max(1, 512 // W))
    if tile_h % chunk_h != 0:
        raise ValueError(f"chunk_h={chunk_h} must divide tile_h={tile_h}")
    n_t = H // tile_h
    TH = tile_h
    THW = TH * W
    TM = chunk_h * W                               # flat rows per chunk (k*W)
    n_chunks = THW // TM

    # Padded flat h1 scratch: rows [base, base+THW) hold the tile's h1,
    # [base-W, base) / [base+THW, base+THW+W) hold the halo image rows,
    # everything else stays zero (guards for the corner taps).  A (dy,dx) tap
    # for flat output row m reads scratch row base + m + dy*W + dx.
    base = _round_up(W + 1, 8)
    P = _round_up(base + THW + W + 1, 8)

    def kernel(x_ref, w1_ref, b1_ref, w2p_ref, b2_ref, w3_ref, b3_ref,
               o_ref, h1_ref):
        f32 = jnp.float32
        bf16 = jnp.bfloat16
        t = pl.program_id(1)
        r0 = t * TH

        def conv1(rows):            # (R, Cin) bf16 -> (R, width) f32, post-ReLU
            h = jnp.dot(rows, w1_ref[...], preferred_element_type=f32)
            return jnp.maximum(h + b1_ref[...], 0.0)

        # ---- conv1 + bn1 + relu into the padded bf16 h1 scratch -------------
        h1_ref[0:base, :] = jnp.zeros((base, width), bf16)
        h1_ref[base + THW:P, :] = jnp.zeros((P - base - THW, width), bf16)

        if n_t > 1:
            @pl.when(t > 0)                    # top halo row (image row r0-1)
            def _():
                xh = x_ref[pl.ds(r0 - 1, 1)].reshape(W, Cin)
                h1_ref[base - W:base, :] = conv1(xh).astype(bf16)

            @pl.when(t < n_t - 1)              # bottom halo row (image row r0+TH)
            def _():
                xh = x_ref[pl.ds(r0 + TH, 1)].reshape(W, Cin)
                h1_ref[base + THW:base + THW + W, :] = conv1(xh).astype(bf16)

        xm = x_ref[pl.ds(r0, TH)].reshape(THW, Cin)
        h1_ref[base:base + THW, :] = conv1(xm).astype(bf16)

        # Column-edge masks for the dx = +-1 taps.  w repeats with period W and
        # chunk starts are multiples of W, so one mask serves every chunk.
        col = lax.broadcasted_iota(jnp.int32, (TM, 1), 0) % W
        mask_l = (col > 0).astype(bf16)            # dx = -1 invalid at w == 0
        mask_r = (col < W - 1).astype(bf16)        # dx = +1 invalid at w == W-1

        # ---- conv2(3x3)+bn2+relu + conv3+bn3 + residual + relu, per chunk ---
        # Register-accumulated: 3 matmuls with K = 3*width (the 3 dy taps of a
        # dx column fused), ref-slice shifts, single output store per chunk.
        def process_chunk(c):
            ms = c * TM                            # flat chunk start in the tile
            acc = None
            for j, dx in enumerate((-1, 0, 1)):
                s0 = base + ms - W + dx            # dy = -1 slice start
                op = jnp.concatenate(
                    [h1_ref[pl.ds(s0, TM), :],             # dy = -1
                     h1_ref[pl.ds(s0 + W, TM), :],         # dy =  0
                     h1_ref[pl.ds(s0 + 2 * W, TM), :]],    # dy = +1
                    axis=1)                        # (TM, 3*width) bf16
                if dx == -1:
                    op = op * mask_l
                elif dx == 1:
                    op = op * mask_r
                part = jnp.dot(op, w2p_ref[j], preferred_element_type=f32)
                acc = part if acc is None else acc + part
            h2 = jnp.maximum(acc + b2_ref[...], 0.0)           # (TM, width) f32
            h3 = jnp.dot(h2.astype(bf16), w3_ref[...],
                         preferred_element_type=f32) + b3_ref[...]
            ch = TM // W
            ident = x_ref[pl.ds(r0 + c * ch, ch)].reshape(TM, Cout).astype(f32)
            y = jnp.maximum(h3 + ident, 0.0).astype(o_ref.dtype)
            o_ref[pl.ds(c * ch, ch), :, :] = y.reshape(ch, W, Cout)

        if n_chunks == 1:
            process_chunk(0)
        else:
            def body(c, carry):
                process_chunk(c)
                return carry
            lax.fori_loop(0, n_chunks, body, 0, unroll=n_chunks <= 8)

    # ---- VMEM budget / cost hints --------------------------------------------
    blk_x = H * W * Cin * 2                    # bf16 image block (resident)
    blk_o = THW * Cout * 2                     # bf16 output row tile
    wt = (Cin * width + 9 * width * width + width * Cout) * 2 \
        + (2 * width + Cout) * 4
    scratch = P * width * 2
    est = 2 * blk_x + 2 * blk_o + 2 * wt + scratch
    vmem_limit = int(min(_vmem_budget_bytes(), max(32 * 2**20, 2 * est)))

    flops = 2 * N * H * W * (Cin * width + 9 * width * width + width * Cout)
    bytes_accessed = N * (blk_x + blk_o) + wt      # x/out once per image, weights once
    cost = pl.CostEstimate(flops=flops, transcendentals=0,
                           bytes_accessed=bytes_accessed)

    return pl.pallas_call(
        kernel,
        out_shape=jax.ShapeDtypeStruct((N, H, W, Cout), jnp.bfloat16),
        grid=(N, n_t),
        in_specs=[
            pl.BlockSpec((None, H, W, Cin), lambda n, t: (n, 0, 0, 0)),
            pl.BlockSpec((Cin, width), lambda n, t: (0, 0)),
            pl.BlockSpec((1, width), lambda n, t: (0, 0)),
            pl.BlockSpec((3, 3 * width, width), lambda n, t: (0, 0, 0)),
            pl.BlockSpec((1, width), lambda n, t: (0, 0)),
            pl.BlockSpec((width, Cout), lambda n, t: (0, 0)),
            pl.BlockSpec((1, Cout), lambda n, t: (0, 0)),
        ],
        out_specs=pl.BlockSpec((None, TH, W, Cout), lambda n, t: (n, t, 0, 0)),
        scratch_shapes=[pltpu.VMEM((P, width), jnp.bfloat16)],
        compiler_params=pltpu.CompilerParams(
            dimension_semantics=("parallel", "parallel"),
            vmem_limit_bytes=vmem_limit),
        cost_estimate=cost,
    )(x, w1, b1, w2p, b2, w3, b3)


def _unpack_w2(w2p, width):
    """(3, 3*width, width) packed taps -> (3, 3, width, width) HWIO."""
    return jnp.stack(
        [jnp.stack([w2p[kx, ky * width:(ky + 1) * width, :] for kx in range(3)],
                   axis=0) for ky in range(3)], axis=0)


def reference_forward(x_nhwc, folded):
    """Pure-JAX reference mirroring the kernel's precision (bf16 matmul inputs,
    f32 accumulation, bf16 identity), f32 output."""
    w1, b1, w2p, b2, w3, b3 = folded
    width = w1.shape[1]
    w2 = _unpack_w2(w2p, width)
    f32 = jnp.float32
    xb = x_nhwc.astype(jnp.bfloat16)
    h = jnp.einsum("nhwc,cd->nhwd", xb, w1, preferred_element_type=f32)
    h = jnp.maximum(h + b1.reshape(1, 1, 1, -1), 0.0)
    h = lax.conv_general_dilated(
        h.astype(jnp.bfloat16), w2, window_strides=(1, 1), padding="SAME",
        dimension_numbers=("NHWC", "HWIO", "NHWC"),
        preferred_element_type=f32)
    h = jnp.maximum(h + b2.reshape(1, 1, 1, -1), 0.0)
    h = jnp.einsum("nhwc,cd->nhwd", h.astype(jnp.bfloat16), w3,
                   preferred_element_type=f32) + b3.reshape(1, 1, 1, -1)
    return jnp.maximum(h + xb.astype(f32), 0.0)


if __name__ == "__main__":
    key = jax.random.PRNGKey(0)
    ks = jax.random.split(key, 8)

    # Bottleneck(inplanes=16, planes=4): width = 4, Cout = planes*4 = 16.
    N, H, W = 2, 8, 8
    inplanes, planes = 16, 4
    width = planes            # base_width=64, groups=1
    cout = planes * 4         # expansion = 4

    x_nchw = jax.random.normal(ks[0], (N, inplanes, H, W), jnp.float32)

    w1 = jax.random.normal(ks[1], (inplanes, width), jnp.float32) * 0.1
    w2 = jax.random.normal(ks[2], (3, 3, width, width), jnp.float32) * 0.1   # HWIO
    w3 = jax.random.normal(ks[3], (width, cout), jnp.float32) * 0.1

    def bn_params(k, c):
        k1, k2, k3, k4 = jax.random.split(k, 4)
        gamma = 1.0 + 0.1 * jax.random.normal(k1, (c,), jnp.float32)
        beta = 0.1 * jax.random.normal(k2, (c,), jnp.float32)
        mean = 0.1 * jax.random.normal(k3, (c,), jnp.float32)
        var = jnp.abs(1.0 + 0.1 * jax.random.normal(k4, (c,), jnp.float32))
        return fold_bn(gamma, beta, mean, var)

    s1, b1 = bn_params(ks[4], width)
    s2, b2 = bn_params(ks[5], width)
    s3, b3 = bn_params(ks[6], cout)

    folded = fold_params((w1, s1, b1, w2, s2, b2, w3, s3, b3))

    # NCHW (PyTorch) -> NHWC (kernel layout)
    x_nhwc = jnp.transpose(x_nchw, (0, 2, 3, 1))
    ref = reference_forward(x_nhwc, folded)

    # Default tiling (single spatial tile at this size).
    out1 = jax.block_until_ready(bottleneck_pallas(x_nhwc, folded))
    # Forced small tiles: exercises the halo rows and the inner chunk loop.
    out2 = jax.block_until_ready(
        bottleneck_pallas(x_nhwc, folded, tile_h=4, chunk_h=2))

    out_nchw = jnp.transpose(out1, (0, 3, 1, 2))   # back to PyTorch layout
    assert out1.shape == (N, H, W, cout)
    assert out_nchw.shape == (N, cout, H, W)
    for out in (out1, out2):
        assert jnp.allclose(out.astype(jnp.float32), ref,
                            atol=2e-2, rtol=2e-2), "mismatch vs reference"

    print("KERNEL_OK")
</pallas_src>

<mosaic_0001>
module attributes {stable_mosaic.version = 11 : i64} {
  func.func @kernel(%arg0: i32, %arg1: i32, %arg2: memref<1x8x8x16xbf16, #tpu.memory_space<vmem>>, %arg3: memref<16x4xbf16, #tpu.memory_space<vmem>>, %arg4: memref<1x4xf32, #tpu.memory_space<vmem>>, %arg5: memref<3x12x4xbf16, #tpu.memory_space<vmem>>, %arg6: memref<1x4xf32, #tpu.memory_space<vmem>>, %arg7: memref<4x16xbf16, #tpu.memory_space<vmem>>, %arg8: memref<1x16xf32, #tpu.memory_space<vmem>>, %arg9: memref<1x8x8x16xbf16, #tpu.memory_space<vmem>>, %arg10: memref<96x4xbf16, #tpu.memory_space<vmem>>) attributes {dimension_semantics = [#tpu.dimension_semantics<parallel>, #tpu.dimension_semantics<parallel>], iteration_bounds = array<i64: 2, 1>, scalar_prefetch = 0 : i64, scratch_operands = 1 : i64, tpu.core_type = #tpu.core_type<tc>, window_params = [{transform_indices = @transform_0, window_bounds = array<i64: 1, 8, 8, 16>}, {pipeline_mode = #tpu.pipeline_mode<synchronous>, transform_indices = @transform_1, window_bounds = array<i64: 16, 4>}, {pipeline_mode = #tpu.pipeline_mode<synchronous>, transform_indices = @transform_2, window_bounds = array<i64: 1, 4>}, {pipeline_mode = #tpu.pipeline_mode<synchronous>, transform_indices = @transform_3, window_bounds = array<i64: 3, 12, 4>}, {pipeline_mode = #tpu.pipeline_mode<synchronous>, transform_indices = @transform_4, window_bounds = array<i64: 1, 4>}, {pipeline_mode = #tpu.pipeline_mode<synchronous>, transform_indices = @transform_5, window_bounds = array<i64: 4, 16>}, {pipeline_mode = #tpu.pipeline_mode<synchronous>, transform_indices = @transform_6, window_bounds = array<i64: 1, 16>}, {transform_indices = @transform_7, window_bounds = array<i64: 1, 8, 8, 16>}]} {
    %c8_i32 = arith.constant 8 : i32
    %0 = arith.muli %arg1, %c8_i32 : i32
    %cst = arith.constant 0.000000e+00 : bf16
    %1 = vector.broadcast %cst : bf16 to vector<16x4xbf16>
    %c0 = arith.constant 0 : index
    %c0_0 = arith.constant 0 : index
    %2 = vector.load %arg10[%c0, %c0_0] : memref<96x4xbf16, #tpu.memory_space<vmem>>, vector<16x4xbf16>
    tpu.vector_store %arg10[%c0, %c0_0], %1 {strides = array<i32>} : memref<96x4xbf16, #tpu.memory_space<vmem>>, vector<16x4xbf16>,
    %cst_1 = arith.constant 0.000000e+00 : bf16
    %3 = vector.broadcast %cst_1 : bf16 to vector<16x4xbf16>
    %c80 = arith.constant 80 : index
    %c0_2 = arith.constant 0 : index
    %4 = vector.load %arg10[%c80, %c0_2] : memref<96x4xbf16, #tpu.memory_space<vmem>>, vector<16x4xbf16>
    tpu.vector_store %arg10[%c80, %c0_2], %3 {strides = array<i32>} : memref<96x4xbf16, #tpu.memory_space<vmem>>, vector<16x4xbf16>,
    %c0_3 = arith.constant 0 : index
    %5 = arith.index_cast %0 : i32 to index
    %c0_4 = arith.constant 0 : index
    %c0_5 = arith.constant 0 : index
    %6 = vector.load %arg2[%c0_3, %5, %c0_4, %c0_5] : memref<1x8x8x16xbf16, #tpu.memory_space<vmem>>, vector<1x8x8x16xbf16>
    %7 = vector.shape_cast %6 : vector<1x8x8x16xbf16> to vector<8x8x16xbf16>
    %8 = vector.shape_cast %7 : vector<8x8x16xbf16> to vector<64x16xbf16>
    %c0_6 = arith.constant 0 : index
    %c0_7 = arith.constant 0 : index
    %9 = vector.load %arg3[%c0_6, %c0_7] : memref<16x4xbf16, #tpu.memory_space<vmem>>, vector<16x4xbf16>
    %cst_8 = arith.constant dense<0.000000e+00> : vector<64x4xf32>
    %10 = tpu.matmul %8, %9, %cst_8 {dimension_numbers = #tpu.dot_dimension_numbers<[1], [0], [0], [1], [0, 0, 1, 1], [], []>} : vector<64x16xbf16>, vector<16x4xbf16>, vector<64x4xf32> -> vector<64x4xf32>
    %c0_9 = arith.constant 0 : index
    %c0_10 = arith.constant 0 : index
    %11 = vector.load %arg4[%c0_9, %c0_10] : memref<1x4xf32, #tpu.memory_space<vmem>>, vector<1x4xf32>
    %12 = vector.broadcast %11 : vector<1x4xf32> to vector<64x4xf32>
    %13 = arith.addf %10, %12 : vector<64x4xf32>
    %cst_11 = arith.constant 0.000000e+00 : f32
    %14 = vector.broadcast %cst_11 : f32 to vector<64x4xf32>
    %15 = arith.maximumf %13, %14 : vector<64x4xf32>
    %16 = arith.truncf %15 : vector<64x4xf32> to vector<64x4xbf16>
    %c16 = arith.constant 16 : index
    %c0_12 = arith.constant 0 : index
    %17 = vector.load %arg10[%c16, %c0_12] : memref<96x4xbf16, #tpu.memory_space<vmem>>, vector<64x4xbf16>
    tpu.vector_store %arg10[%c16, %c0_12], %16 {strides = array<i32>} : memref<96x4xbf16, #tpu.memory_space<vmem>>, vector<64x4xbf16>,
    %18 = tpu.iota {dimensions = array<i32: 0>} : vector<64x1xi32>
    %c8_i32_13 = arith.constant 8 : i32
    %c0_i32 = arith.constant 0 : i32
    %19 = arith.cmpi eq, %c8_i32_13, %c0_i32 : i32
    %c1_i32 = arith.constant 1 : i32
    %20 = arith.select %19, %c1_i32, %c8_i32_13 : i32
    %21 = vector.broadcast %20 : i32 to vector<64x1xi32>
    %22 = arith.remsi %18, %21 : vector<64x1xi32>
    %c0_i32_14 = arith.constant 0 : i32
    %23 = vector.broadcast %c0_i32_14 : i32 to vector<64x1xi32>
    %24 = arith.cmpi ne, %22, %23 : vector<64x1xi32>
    %c0_i32_15 = arith.constant 0 : i32
    %25 = vector.broadcast %c0_i32_15 : i32 to vector<64x1xi32>
    %26 = arith.cmpi slt, %22, %25 : vector<64x1xi32>
    %c0_i32_16 = arith.constant 0 : i32
    %27 = arith.cmpi slt, %20, %c0_i32_16 : i32
    %28 = vector.broadcast %27 : i1 to vector<64x1xi1>
    %29 = vector.broadcast %28 : vector<64x1xi1> to vector<64x1xi1>
    %30 = arith.xori %26, %29 : vector<64x1xi1>
    %31 = arith.andi %30, %24 : vector<64x1xi1>
    %32 = vector.broadcast %20 : i32 to vector<64x1xi32>
    %33 = arith.addi %22, %32 : vector<64x1xi32>
    %34 = arith.select %31, %33, %22 : vector<64x1xi1>, vector<64x1xi32>
    %c0_i32_17 = arith.constant 0 : i32
    %35 = vector.broadcast %c0_i32_17 : i32 to vector<64x1xi32>
    %36 = arith.cmpi sgt, %34, %35 : vector<64x1xi32>
    %37 = arith.extui %36 : vector<64x1xi1> to vector<64x1xi32>
    %38 = arith.sitofp %37 : vector<64x1xi32> to vector<64x1xf32>
    %39 = arith.truncf %38 : vector<64x1xf32> to vector<64x1xbf16>
    %c7_i32 = arith.constant 7 : i32
    %40 = vector.broadcast %c7_i32 : i32 to vector<64x1xi32>
    %41 = arith.cmpi slt, %34, %40 : vector<64x1xi32>
    %42 = arith.extui %41 : vector<64x1xi1> to vector<64x1xi32>
    %43 = arith.sitofp %42 : vector<64x1xi32> to vector<64x1xf32>
    %44 = arith.truncf %43 : vector<64x1xf32> to vector<64x1xbf16>
    %c7 = arith.constant 7 : index
    %c0_18 = arith.constant 0 : index
    %45 = vector.load %arg10[%c7, %c0_18] : memref<96x4xbf16, #tpu.memory_space<vmem>>, vector<64x4xbf16>
    %c15 = arith.constant 15 : index
    %c0_19 = arith.constant 0 : index
    %46 = vector.load %arg10[%c15, %c0_19] : memref<96x4xbf16, #tpu.memory_space<vmem>>, vector<64x4xbf16>
    %c23 = arith.constant 23 : index
    %c0_20 = arith.constant 0 : index
    %47 = vector.load %arg10[%c23, %c0_20] : memref<96x4xbf16, #tpu.memory_space<vmem>>, vector<64x4xbf16>
    %48 = tpu.concatenate %45, %46, %47 in 1 : vector<64x4xbf16>, vector<64x4xbf16>, vector<64x4xbf16> -> vector<64x12xbf16>
    %49 = vector.broadcast %39 : vector<64x1xbf16> to vector<64x12xbf16>
    %50 = arith.mulf %48, %49 : vector<64x12xbf16>
    %c0_21 = arith.constant 0 : index
    %c0_22 = arith.constant 0 : index
    %c0_23 = arith.constant 0 : index
    %51 = vector.load %arg5[%c0_21, %c0_22, %c0_23] : memref<3x12x4xbf16, #tpu.memory_space<vmem>>, vector<1x12x4xbf16>
    %52 = vector.shape_cast %51 : vector<1x12x4xbf16> to vector<12x4xbf16>
    %cst_24 = arith.constant dense<0.000000e+00> : vector<64x4xf32>
    %53 = tpu.matmul %50, %52, %cst_24 {dimension_numbers = #tpu.dot_dimension_numbers<[1], [0], [0], [1], [0, 0, 1, 1], [], []>} : vector<64x12xbf16>, vector<12x4xbf16>, vector<64x4xf32> -> vector<64x4xf32>
    %c8 = arith.constant 8 : index
    %c0_25 = arith.constant 0 : index
    %54 = vector.load %arg10[%c8, %c0_25] : memref<96x4xbf16, #tpu.memory_space<vmem>>, vector<64x4xbf16>
    %c16_26 = arith.constant 16 : index
    %c0_27 = arith.constant 0 : index
    %55 = vector.load %arg10[%c16_26, %c0_27] : memref<96x4xbf16, #tpu.memory_space<vmem>>, vector<64x4xbf16>
    %c24 = arith.constant 24 : index
    %c0_28 = arith.constant 0 : index
    %56 = vector.load %arg10[%c24, %c0_28] : memref<96x4xbf16, #tpu.memory_space<vmem>>, vector<64x4xbf16>
    %57 = tpu.concatenate %54, %55, %56 in 1 : vector<64x4xbf16>, vector<64x4xbf16>, vector<64x4xbf16> -> vector<64x12xbf16>
    %c1 = arith.constant 1 : index
    %c0_29 = arith.constant 0 : index
    %c0_30 = arith.constant 0 : index
    %58 = vector.load %arg5[%c1, %c0_29, %c0_30] : memref<3x12x4xbf16, #tpu.memory_space<vmem>>, vector<1x12x4xbf16>
    %59 = vector.shape_cast %58 : vector<1x12x4xbf16> to vector<12x4xbf16>
    %cst_31 = arith.constant dense<0.000000e+00> : vector<64x4xf32>
    %60 = tpu.matmul %57, %59, %cst_31 {dimension_numbers = #tpu.dot_dimension_numbers<[1], [0], [0], [1], [0, 0, 1, 1], [], []>} : vector<64x12xbf16>, vector<12x4xbf16>, vector<64x4xf32> -> vector<64x4xf32>
    %61 = arith.addf %53, %60 : vector<64x4xf32>
    %c9 = arith.constant 9 : index
    %c0_32 = arith.constant 0 : index
    %62 = vector.load %arg10[%c9, %c0_32] : memref<96x4xbf16, #tpu.memory_space<vmem>>, vector<64x4xbf16>
    %c17 = arith.constant 17 : index
    %c0_33 = arith.constant 0 : index
    %63 = vector.load %arg10[%c17, %c0_33] : memref<96x4xbf16, #tpu.memory_space<vmem>>, vector<64x4xbf16>
    %c25 = arith.constant 25 : index
    %c0_34 = arith.constant 0 : index
    %64 = vector.load %arg10[%c25, %c0_34] : memref<96x4xbf16, #tpu.memory_space<vmem>>, vector<64x4xbf16>
    %65 = tpu.concatenate %62, %63, %64 in 1 : vector<64x4xbf16>, vector<64x4xbf16>, vector<64x4xbf16> -> vector<64x12xbf16>
    %66 = vector.broadcast %44 : vector<64x1xbf16> to vector<64x12xbf16>
    %67 = arith.mulf %65, %66 : vector<64x12xbf16>
    %c2 = arith.constant 2 : index
    %c0_35 = arith.constant 0 : index
    %c0_36 = arith.constant 0 : index
    %68 = vector.load %arg5[%c2, %c0_35, %c0_36] : memref<3x12x4xbf16, #tpu.memory_space<vmem>>, vector<1x12x4xbf16>
    %69 = vector.shape_cast %68 : vector<1x12x4xbf16> to vector<12x4xbf16>
    %cst_37 = arith.constant dense<0.000000e+00> : vector<64x4xf32>
    %70 = tpu.matmul %67, %69, %cst_37 {dimension_numbers = #tpu.dot_dimension_numbers<[1], [0], [0], [1], [0, 0, 1, 1], [], []>} : vector<64x12xbf16>, vector<12x4xbf16>, vector<64x4xf32> -> vector<64x4xf32>
    %71 = arith.addf %61, %70 : vector<64x4xf32>
    %c0_38 = arith.constant 0 : index
    %c0_39 = arith.constant 0 : index
    %72 = vector.load %arg6[%c0_38, %c0_39] : memref<1x4xf32, #tpu.memory_space<vmem>>, vector<1x4xf32>
    %73 = vector.broadcast %72 : vector<1x4xf32> to vector<64x4xf32>
    %74 = arith.addf %71, %73 : vector<64x4xf32>
    %cst_40 = arith.constant 0.000000e+00 : f32
    %75 = vector.broadcast %cst_40 : f32 to vector<64x4xf32>
    %76 = arith.maximumf %74, %75 : vector<64x4xf32>
    %77 = arith.truncf %76 : vector<64x4xf32> to vector<64x4xbf16>
    %c0_41 = arith.constant 0 : index
    %c0_42 = arith.constant 0 : index
    %78 = vector.load %arg7[%c0_41, %c0_42] : memref<4x16xbf16, #tpu.memory_space<vmem>>, vector<4x16xbf16>
    %cst_43 = arith.constant dense<0.000000e+00> : vector<64x16xf32>
    %79 = tpu.matmul %77, %78, %cst_43 {dimension_numbers = #tpu.dot_dimension_numbers<[1], [0], [0], [1], [0, 0, 1, 1], [], []>} : vector<64x4xbf16>, vector<4x16xbf16>, vector<64x16xf32> -> vector<64x16xf32>
    %c0_44 = arith.constant 0 : index
    %c0_45 = arith.constant 0 : index
    %80 = vector.load %arg8[%c0_44, %c0_45] : memref<1x16xf32, #tpu.memory_space<vmem>>, vector<1x16xf32>
    %81 = vector.broadcast %80 : vector<1x16xf32> to vector<64x16xf32>
    %82 = arith.addf %79, %81 : vector<64x16xf32>
    %c0_i32_46 = arith.constant 0 : i32
    %83 = arith.addi %0, %c0_i32_46 : i32
    %c0_47 = arith.constant 0 : index
    %84 = arith.index_cast %83 : i32 to index
    %c0_48 = arith.constant 0 : index
    %c0_49 = arith.constant 0 : index
    %85 = vector.load %arg2[%c0_47, %84, %c0_48, %c0_49] : memref<1x8x8x16xbf16, #tpu.memory_space<vmem>>, vector<1x8x8x16xbf16>
    %86 = vector.shape_cast %85 : vector<1x8x8x16xbf16> to vector<8x8x16xbf16>
    %87 = vector.shape_cast %86 : vector<8x8x16xbf16> to vector<64x16xbf16>
    %88 = arith.extf %87 : vector<64x16xbf16> to vector<64x16xf32>
    %89 = arith.addf %82, %88 : vector<64x16xf32>
    %cst_50 = arith.constant 0.000000e+00 : f32
    %90 = vector.broadcast %cst_50 : f32 to vector<64x16xf32>
    %91 = arith.maximumf %89, %90 : vector<64x16xf32>
    %92 = arith.truncf %91 : vector<64x16xf32> to vector<64x16xbf16>
    %93 = vector.shape_cast %92 : vector<64x16xbf16> to vector<8x8x16xbf16>
    %c0_51 = arith.constant 0 : index
    %c0_52 = arith.constant 0 : index
    %c0_53 = arith.constant 0 : index
    %c0_54 = arith.constant 0 : index
    %94 = vector.load %arg9[%c0_51, %c0_52, %c0_53, %c0_54] : memref<1x8x8x16xbf16, #tpu.memory_space<vmem>>, vector<1x8x8x16xbf16>
    %95 = vector.shape_cast %94 : vector<1x8x8x16xbf16> to vector<8x8x16xbf16>
    %96 = vector.shape_cast %93 : vector<8x8x16xbf16> to vector<1x8x8x16xbf16>
    tpu.vector_store %arg9[%c0_51, %c0_52, %c0_53, %c0_54], %96 {strides = array<i32>} : memref<1x8x8x16xbf16, #tpu.memory_space<vmem>>, vector<1x8x8x16xbf16>,
    return
  }
  func.func @transform_0(%arg0: i32, %arg1: i32) -> (i32, i32, i32, i32) {
    %c0_i32 = arith.constant 0 : i32
    %c0_i32_0 = arith.constant 0 : i32
    %c0_i32_1 = arith.constant 0 : i32
    %c0_i32_2 = arith.constant 0 : i32
    return %arg0, %c0_i32, %c0_i32_0, %c0_i32_1 : i32, i32, i32, i32
  }
  func.func @transform_1(%arg0: i32, %arg1: i32) -> (i32, i32) {
    %c0_i32 = arith.constant 0 : i32
    %c0_i32_0 = arith.constant 0 : i32
    %c0_i32_1 = arith.constant 0 : i32
    return %c0_i32, %c0_i32_0 : i32, i32
  }
  func.func @transform_2(%arg0: i32, %arg1: i32) -> (i32, i32) {
    %c0_i32 = arith.constant 0 : i32
    %c0_i32_0 = arith.constant 0 : i32
    %c0_i32_1 = arith.constant 0 : i32
    return %c0_i32, %c0_i32_0 : i32, i32
  }
  func.func @transform_3(%arg0: i32, %arg1: i32) -> (i32, i32, i32) {
    %c0_i32 = arith.constant 0 : i32
    %c0_i32_0 = arith.constant 0 : i32
    %c0_i32_1 = arith.constant 0 : i32
    %c0_i32_2 = arith.constant 0 : i32
    return %c0_i32, %c0_i32_0, %c0_i32_1 : i32, i32, i32
  }
  func.func @transform_4(%arg0: i32, %arg1: i32) -> (i32, i32) {
    %c0_i32 = arith.constant 0 : i32
    %c0_i32_0 = arith.constant 0 : i32
    %c0_i32_1 = arith.constant 0 : i32
    return %c0_i32, %c0_i32_0 : i32, i32
  }
  func.func @transform_5(%arg0: i32, %arg1: i32) -> (i32, i32) {
    %c0_i32 = arith.constant 0 : i32
    %c0_i32_0 = arith.constant 0 : i32
    %c0_i32_1 = arith.constant 0 : i32
    return %c0_i32, %c0_i32_0 : i32, i32
  }
  func.func @transform_6(%arg0: i32, %arg1: i32) -> (i32, i32) {
    %c0_i32 = arith.constant 0 : i32
    %c0_i32_0 = arith.constant 0 : i32
    %c0_i32_1 = arith.constant 0 : i32
    return %c0_i32, %c0_i32_0 : i32, i32
  }
  func.func @transform_7(%arg0: i32, %arg1: i32) -> (i32, i32, i32, i32) {
    %c0_i32 = arith.constant 0 : i32
    %c0_i32_0 = arith.constant 0 : i32
    %c0_i32_1 = arith.constant 0 : i32
    return %arg0, %arg1, %c0_i32, %c0_i32_0 : i32, i32, i32, i32
  }
}

</mosaic_0001>

<llo_original>
// kernel: tpu_custom_call.1
$region0: #{tpu_custom_call.1}
  #allocation0 [shape = 'u32[]', space=smem, size = 0x4, offset = 0x4, fixed_abs, tag = 'smem constant byte address 0x4 - core index']
  #allocation1 [shape = 'u32[144,128]{1,0:T(1,128)}', space=vmem, size = 0x12000, scoped, tag = 'internal scratch']
  #allocation2 [shape = 'bf16[96,4]{1,0:T(16,128)(2,1)}', space=vmem, size = 0x6000, scoped, tag = 'scratch operand']
  %s0 = inlined_call_operand.hbm [shape: bf16[2,8,8,16], index: 0, kind: input, shape index: {}]
  %s1 = inlined_call_operand.vmem [shape: bf16[16,4], index: 1, kind: input, shape index: {}]
  %s2 = inlined_call_operand.vmem [shape: f32[1,4], index: 2, kind: input, shape index: {}]
  %s3 = inlined_call_operand.vmem [shape: bf16[3,12,4], index: 3, kind: input, shape index: {}]
  %s4 = inlined_call_operand.vmem [shape: f32[1,4], index: 4, kind: input, shape index: {}]
  %s5 = inlined_call_operand.vmem [shape: bf16[4,16], index: 5, kind: input, shape index: {}]
  %s6 = inlined_call_operand.vmem [shape: f32[1,16], index: 6, kind: input, shape index: {}]
  %s7 = inlined_call_operand.hbm [shape: bf16[2,8,8,16], index: 7, kind: output, shape index: {}]
  %s8 = sld [smem:[#allocation0]]
  $region65: #{tpu_custom_call.1} parent=0
    _
  %s10 = ssub.s32 1, %s8
  %s11 = scalar_select 0, %s10, %s8
  $region1: #{tpu_custom_call.1} parent=0
    #allocation3 [shape = 'u8[32768]{0}', space=vmem, size = 0x8000, scoped, tag = 'input window, operand 0']
    #allocation4 [shape = 's32[2]{0}', space=sflag, size = 0x8, scoped, tag = 'scoped memory for tpu_custom_call.1']
    #allocation5 [shape = 's32[2]{0}', space=sflag, size = 0x8, scoped, tag = 'scoped memory for tpu_custom_call.1']
    #allocation6 [shape = 'u8[32768]{0}', space=vmem, size = 0x8000, scoped, tag = 'output window, operand 0']
    %12 = vsyncpa [#allocation4], 0
    %s13 = scalar_lea.sflag [#allocation4], 1
    %14 = vsyncpa %s13, 0
    %15 = vsyncpa [#allocation5], 0
    %s16 = scalar_lea.sflag [#allocation5], 1
    %17 = vsyncpa %s16, 0
    loop: start=0, step=1, limit=4
    $region2: #{tpu_custom_call.1} parent=1 // loop_pre_header
      _
    $region3: #{tpu_custom_call.1} parent=1 // loop_header
      %s19 = sphi 0, %s23
      %p20 = scmp.ge.s32.totalorder %s19, 4
      %s26 = sphi 0, %s38
      %s27 = sphi 0, %s34
      %s28 = sphi 0, %s26
      %s29 = sphi 0, %s27
      %s30 = sphi 0, %s28
      %s31 = sphi 0, %s29
      %s41 = sphi 0, %s43
      %s44 = sphi 0, %s41
      %s45 = sphi 0, %s44
      %s61 = sphi 0, %s45
      %s65 = sphi 0, %s65
      %s67 = sphi 0, %s65
      %s68 = sphi 0, %s67
      %s82 = sphi 0, %s68
      %s86 = sphi 0, %s86
      %s88 = sphi 0, %s86
      %s89 = sphi 0, %s88
      %s103 = sphi 0, %s89
      %s107 = sphi 0, %s107
      %s109 = sphi 0, %s107
      %s110 = sphi 0, %s109
      %s124 = sphi 0, %s110
      %s128 = sphi 0, %s128
      %s130 = sphi 0, %s128
      %s131 = sphi 0, %s130
      %s145 = sphi 0, %s131
      %s149 = sphi 0, %s149
      %s151 = sphi 0, %s149
      %s152 = sphi 0, %s151
      %s166 = sphi 0, %s152
      %s170 = sphi 0, %s170
      %s172 = sphi 0, %s170
      %s173 = sphi 0, %s172
      %s187 = sphi 0, %s173
      %s195 = sphi 0, %s197
      %s198 = sphi 0, %s195
      %s199 = sphi 0, %s198
      %s215 = sphi 0, %s199
    $region4: #{tpu_custom_call.1} parent=1 // loop_header_branch
      %22 = sbr.rel (%p20) target = $region8
    $region5: #{tpu_custom_call.1} parent=1 // loop_body
      %s24 = ssub.s32 %s19, 1
      %s25 = ssub.s32 %s19, 2
      %s32 = sadd.s32 1, %s27
      %p33 = scmp.ge.s32.totalorder %s32, 1
      %s34 = scalar_select %p33, 0, %s32
      %s35 = sadd.s32 1, %s26
      %s36 = scalar_select %p33, %s35, %s26
      %p37 = scmp.ge.s32.totalorder %s36, 2
      %s38 = scalar_select %p37, 0, %s36
      %s39 = ssub.s32 %s26, %s38
      %p40 = scmp.eq.s32.totalorder %s39, 0
      %s42 = sadd.s32 %s41, 1
      %s43 = scalar_select %p40, %s41, %s42
      %p46 = pneg %p40
      %p47 = scmp.eq.s32.totalorder %s19, 1
      %p48 = por %p46, %p47
      %p49 = scmp.ne.s32.totalorder %s41, %s44
      %p50 = scmp.eq.s32.totalorder %s19, 0
      %p51 = por %p49, %p50
      %p52 = scmp.ne.s32.totalorder %s41, %s44
      %p53 = scmp.eq.s32.totalorder %s24, 1
      %p54 = por %p52, %p53
      %p55 = scmp.ne.s32.totalorder %s44, %s45
      %p56 = scmp.eq.s32.totalorder %s24, 0
      %p57 = por %p55, %p56
      %p58 = scmp.ne.s32.totalorder %s44, %s45
      %p59 = scmp.eq.s32.totalorder %s25, 1
      %p60 = por %p58, %p59
      %p62 = scmp.ne.s32.totalorder %s45, %s61
      %p63 = scmp.eq.s32.totalorder %s25, 0
      %p64 = por %p62, %p63
      %s66 = sadd.s32 %s65, 1
      %p69 = scmp.eq.s32.totalorder %s19, 1
      %p70 = scmp.ne.s32.totalorder %s65, %s67
      %p71 = scmp.eq.s32.totalorder %s19, 0
      %p72 = por %p70, %p71
      %p73 = scmp.ne.s32.totalorder %s65, %s67
      %p74 = scmp.eq.s32.totalorder %s24, 1
      %p75 = por %p73, %p74
      %p76 = scmp.ne.s32.totalorder %s67, %s68
      %p77 = scmp.eq.s32.totalorder %s24, 0
      %p78 = por %p76, %p77
      %p79 = scmp.ne.s32.totalorder %s67, %s68
      %p80 = scmp.eq.s32.totalorder %s25, 1
      %p81 = por %p79, %p80
      %p83 = scmp.ne.s32.totalorder %s68, %s82
      %p84 = scmp.eq.s32.totalorder %s25, 0
      %p85 = por %p83, %p84
      %s87 = sadd.s32 %s86, 1
      %p90 = scmp.eq.s32.totalorder %s19, 1
      %p91 = scmp.ne.s32.totalorder %s86, %s88
      %p92 = scmp.eq.s32.totalorder %s19, 0
      %p93 = por %p91, %p92
      %p94 = scmp.ne.s32.totalorder %s86, %s88
      %p95 = scmp.eq.s32.totalorder %s24, 1
      %p96 = por %p94, %p95
      %p97 = scmp.ne.s32.totalorder %s88, %s89
      %p98 = scmp.eq.s32.totalorder %s24, 0
      %p99 = por %p97, %p98
      %p100 = scmp.ne.s32.totalorder %s88, %s89
      %p101 = scmp.eq.s32.totalorder %s25, 1
      %p102 = por %p100, %p101
      %p104 = scmp.ne.s32.totalorder %s89, %s103
      %p105 = scmp.eq.s32.totalorder %s25, 0
      %p106 = por %p104, %p105
      %s108 = sadd.s32 %s107, 1
      %p111 = scmp.eq.s32.totalorder %s19, 1
      %p112 = scmp.ne.s32.totalorder %s107, %s109
      %p113 = scmp.eq.s32.totalorder %s19, 0
      %p114 = por %p112, %p113
      %p115 = scmp.ne.s32.totalorder %s107, %s109
      %p116 = scmp.eq.s32.totalorder %s24, 1
      %p117 = por %p115, %p116
      %p118 = scmp.ne.s32.totalorder %s109, %s110
      %p119 = scmp.eq.s32.totalorder %s24, 0
      %p120 = por %p118, %p119
      %p121 = scmp.ne.s32.totalorder %s109, %s110
      %p122 = scmp.eq.s32.totalorder %s25, 1
      %p123 = por %p121, %p122
      %p125 = scmp.ne.s32.totalorder %s110, %s124
      %p126 = scmp.eq.s32.totalorder %s25, 0
      %p127 = por %p125, %p126
      %s129 = sadd.s32 %s128, 1
      %p132 = scmp.eq.s32.totalorder %s19, 1
      %p133 = scmp.ne.s32.totalorder %s128, %s130
      %p134 = scmp.eq.s32.totalorder %s19, 0
      %p135 = por %p133, %p134
      %p136 = scmp.ne.s32.totalorder %s128, %s130
      %p137 = scmp.eq.s32.totalorder %s24, 1
      %p138 = por %p136, %p137
      %p139 = scmp.ne.s32.totalorder %s130, %s131
      %p140 = scmp.eq.s32.totalorder %s24, 0
      %p141 = por %p139, %p140
      %p142 = scmp.ne.s32.totalorder %s130, %s131
      %p143 = scmp.eq.s32.totalorder %s25, 1
      %p144 = por %p142, %p143
      %p146 = scmp.ne.s32.totalorder %s131, %s145
      %p147 = scmp.eq.s32.totalorder %s25, 0
      %p148 = por %p146, %p147
      %s150 = sadd.s32 %s149, 1
      %p153 = scmp.eq.s32.totalorder %s19, 1
      %p154 = scmp.ne.s32.totalorder %s149, %s151
      %p155 = scmp.eq.s32.totalorder %s19, 0
      %p156 = por %p154, %p155
      %p157 = scmp.ne.s32.totalorder %s149, %s151
      %p158 = scmp.eq.s32.totalorder %s24, 1
      %p159 = por %p157, %p158
      %p160 = scmp.ne.s32.totalorder %s151, %s152
      %p161 = scmp.eq.s32.totalorder %s24, 0
      %p162 = por %p160, %p161
      %p163 = scmp.ne.s32.totalorder %s151, %s152
      %p164 = scmp.eq.s32.totalorder %s25, 1
      %p165 = por %p163, %p164
      %p167 = scmp.ne.s32.totalorder %s152, %s166
      %p168 = scmp.eq.s32.totalorder %s25, 0
      %p169 = por %p167, %p168
      %s171 = sadd.s32 %s170, 1
      %p174 = scmp.eq.s32.totalorder %s19, 1
      %p175 = scmp.ne.s32.totalorder %s170, %s172
      %p176 = scmp.eq.s32.totalorder %s19, 0
      %p177 = por %p175, %p176
      %p178 = scmp.ne.s32.totalorder %s170, %s172
      %p179 = scmp.eq.s32.totalorder %s24, 1
      %p180 = por %p178, %p179
      %p181 = scmp.ne.s32.totalorder %s172, %s173
      %p182 = scmp.eq.s32.totalorder %s24, 0
      %p183 = por %p181, %p182
      %p184 = scmp.ne.s32.totalorder %s172, %s173
      %p185 = scmp.eq.s32.totalorder %s25, 1
      %p186 = por %p184, %p185
      %p188 = scmp.ne.s32.totalorder %s173, %s187
      %p189 = scmp.eq.s32.totalorder %s25, 0
      %p190 = por %p188, %p189
      %s191 = ssub.s32 %s26, %s38
      %s192 = ssub.s32 %s27, %s34
      %s193 = sor.u32 %s191, %s192
      %p194 = scmp.eq.s32.totalorder %s193, 0
      %s196 = sadd.s32 %s195, 1
      %s197 = scalar_select %p194, %s195, %s196
      %p200 = pneg %p194
      %p201 = scmp.eq.s32.totalorder %s19, 1
      %p202 = por %p200, %p201
      %p203 = scmp.ne.s32.totalorder %s195, %s198
      %p204 = scmp.eq.s32.totalorder %s19, 0
      %p205 = por %p203, %p204
      %p206 = scmp.ne.s32.totalorder %s195, %s198
      %p207 = scmp.eq.s32.totalorder %s24, 1
      %p208 = por %p206, %p207
      %p209 = scmp.ne.s32.totalorder %s198, %s199
      %p210 = scmp.eq.s32.totalorder %s24, 0
      %p211 = por %p209, %p210
      %p212 = scmp.ne.s32.totalorder %s198, %s199
      %p213 = scmp.eq.s32.totalorder %s25, 1
      %p214 = por %p212, %p213
      %p216 = scmp.ne.s32.totalorder %s199, %s215
      %p217 = scmp.eq.s32.totalorder %s25, 0
      %p218 = por %p216, %p217
      %p219 = scmp.le.s32.totalorder 1, %s19
      %p220 = scmp.lt.s32.totalorder %s19, 3
      %p221 = pnand %p219, %p220
      %p222 = pneg %p221
      // Predicated region
      $region9: #{tpu_custom_call.1} parent=5 // pred_check
        _
      $region10: #{tpu_custom_call.1} parent=5 // pred_check_branch
        %224 = sbr.rel (%p221) target = $region12
      $region11: #{tpu_custom_call.1} parent=5 // pred_region
        %s225 = ssub.s32 %s19, 1
        // Predicated region
        $region13: #{tpu_custom_call.1} parent=11 // pred_check
          %p226 = pneg %p78
        $region14: #{tpu_custom_call.1} parent=11 // pred_check_branch
          %228 = sbr.rel (%p226) target = $region16
        $region15: #{tpu_custom_call.1} parent=11 // pred_region
          _
        $region16: #{tpu_custom_call.1} parent=11 // pred_fallthru
          _
        // Predicated region
        $region17: #{tpu_custom_call.1} parent=11 // pred_check
          %p229 = pneg %p99
        $region18: #{tpu_custom_call.1} parent=11 // pred_check_branch
          %231 = sbr.rel (%p229) target = $region20
        $region19: #{tpu_custom_call.1} parent=11 // pred_region
          _
        $region20: #{tpu_custom_call.1} parent=11 // pred_fallthru
          _
        // Predicated region
        $region21: #{tpu_custom_call.1} parent=11 // pred_check
          %p232 = pneg %p120
        $region22: #{tpu_custom_call.1} parent=11 // pred_check_branch
          %234 = sbr.rel (%p232) target = $region24
        $region23: #{tpu_custom_call.1} parent=11 // pred_region
          _
        $region24: #{tpu_custom_call.1} parent=11 // pred_fallthru
          _
        // Predicated region
        $region25: #{tpu_custom_call.1} parent=11 // pred_check
          %p235 = pneg %p141
        $region26: #{tpu_custom_call.1} parent=11 // pred_check_branch
          %237 = sbr.rel (%p235) target = $region28
        $region27: #{tpu_custom_call.1} parent=11 // pred_region
          _
        $region28: #{tpu_custom_call.1} parent=11 // pred_fallthru
          _
        // Predicated region
        $region29: #{tpu_custom_call.1} parent=11 // pred_check
          %p238 = pneg %p162
        $region30: #{tpu_custom_call.1} parent=11 // pred_check_branch
          %240 = sbr.rel (%p238) target = $region32
        $region31: #{tpu_custom_call.1} parent=11 // pred_region
          _
        $region32: #{tpu_custom_call.1} parent=11 // pred_fallthru
          _
        // Predicated region
        $region33: #{tpu_custom_call.1} parent=11 // pred_check
          %p241 = pneg %p183
        $region34: #{tpu_custom_call.1} parent=11 // pred_check_branch
          %243 = sbr.rel (%p241) target = $region36
        $region35: #{tpu_custom_call.1} parent=11 // pred_region
          _
        $region36: #{tpu_custom_call.1} parent=11 // pred_fallthru
          _
      $region12: #{tpu_custom_call.1} parent=5 // pred_fallthru
        _
      %p244 = scmp.lt.s32.totalorder %s19, 2
      // Predicated region
      $region37: #{tpu_custom_call.1} parent=5 // pred_check
        %p245 = pneg %p244
      $region38: #{tpu_custom_call.1} parent=5 // pred_check_branch
        %247 = sbr.rel (%p245) target = $region40
      $region39: #{tpu_custom_call.1} parent=5 // pred_region
        // Predicated region
        $region41: #{tpu_custom_call.1} parent=39 // pred_check
          %p248 = pneg %p51
        $region42: #{tpu_custom_call.1} parent=39 // pred_check_branch
          %250 = sbr.rel (%p248) target = $region44
        $region43: #{tpu_custom_call.1} parent=39 // pred_region
          %s251 = sand.u32 %s41, 1
          %s252 = scalar_lea.sflag [#allocation4], %s251
          %s253 = sand.u32 %s41, 1
          %s254 = smul.addr %s253, 32
          %s255 = scalar_lea.vmem [#allocation3], %s254
          %s257 = ssub.s32 512, 512
          %258 = vsyncadd %s252, %s257
          %s259 = smul.addr %s26, 8
          %s260 = smul.addr %s259, 64
          %s261 = scalar_lea.hbm %s0, %s260
          %s262 = sshll.u32 %s255, 4
          %s263 = int_to_ptr.vmem [resolvable:$true] %s262
          %268 = dma.hbm_to_vmem [thread:$0]  %s261, 512, %s263, %s252, 64, 64, 4
        $region44: #{tpu_custom_call.1} parent=39 // pred_fallthru
          _
      $region40: #{tpu_custom_call.1} parent=5 // pred_fallthru
        _
      %p269 = scmp.le.s32.totalorder 1, %s19
      %p270 = scmp.lt.s32.totalorder %s19, 3
      %p271 = pnand %p269, %p270
      %p272 = pneg %p271
      // Predicated region
      $region45: #{tpu_custom_call.1} parent=5 // pred_check
        _
      $region46: #{tpu_custom_call.1} parent=5 // pred_check_branch
        %274 = sbr.rel (%p271) target = $region48
      $region47: #{tpu_custom_call.1} parent=5 // pred_region
        %s275 = ssub.s32 %s19, 1
        %s276 = sand.u32 %s44, 1
        %s277 = scalar_lea.sflag [#allocation4], %s276
        %s278 = sand.u32 %s44, 1
        %s279 = smul.addr %s278, 32
        %s280 = scalar_lea.vmem [#allocation3], %s279
        // Predicated region
        $region49: #{tpu_custom_call.1} parent=47 // pred_check
          %p281 = pneg %p57
        $region50: #{tpu_custom_call.1} parent=47 // pred_check_branch
          %283 = sbr.rel (%p281) target = $region52
        $region51: #{tpu_custom_call.1} parent=47 // pred_region
          %284 = dma.done %s277, 512
        $region52: #{tpu_custom_call.1} parent=47 // pred_fallthru
          _
        %s285 = sand.u32 %s44, 1
        %s286 = scalar_lea.sflag [#allocation4], %s285
        %s287 = sand.u32 %s44, 1
        %s288 = smul.addr %s287, 32
        %s289 = scalar_lea.vmem [#allocation3], %s288
        %p290 = pneg %p57
        %p291 = pneg %p54
        %p292 = pneg %p78
        %p293 = pneg %p75
        %p294 = pneg %p99
        %p295 = pneg %p96
        %p296 = pneg %p120
        %p297 = pneg %p117
        %p298 = pneg %p141
        %p299 = pneg %p138
        %p300 = pneg %p162
        %p301 = pneg %p159
        %p302 = pneg %p183
        %p303 = pneg %p180
        %p304 = pneg %p211
        %p305 = pneg %p208
        %s306 = sand.u32 %s198, 1
        %s307 = scalar_lea.sflag [#allocation5], %s306
        %s308 = sand.u32 %s198, 1
        %s309 = smul.addr %s308, 32
        %s310 = scalar_lea.vmem [#allocation6], %s309
        %s311 = smul.u32 8, %s29
        %s313 = smul.u32 %s29, 8
        %vm314 = vcmask 31744
        %315 = vst.msk [vmem:[#allocation2] sm:$0xff] %vm314, 0
        %316 = vst.msk [vmem:[#allocation2 + $0x28] sm:$0xff] %vm314, 0
        %s317 = smul.addr %s313, 4
        %s318 = scalar_lea.vmem %s280, %s317 [#allocation3]
        %v319 = vld [vmem:[%s318] sm:$0xf]
        %v320 = vld [vmem:[%s318 + $0x4] sm:$0xf]
        %v321 = vld [vmem:[%s318 + $0x8] sm:$0xf]
        %v322 = vld [vmem:[%s318 + $0xc] sm:$0xf]
        %v323 = vld [vmem:[%s318 + $0x10] sm:$0xf]
        %v324 = vld [vmem:[%s318 + $0x14] sm:$0xf]
        %v325 = vld [vmem:[%s318 + $0x18] sm:$0xf]
        %v326 = vld [vmem:[%s318 + $0x1c] sm:$0xf]
        %v327 = vld [vmem:[%s1] sm:$0xf]
        %v328 = vld [vmem:[%s1 + $0x4] sm:$0xf]
        %v329 = vld [vmem:[%s2] sm:$0x1]
        %v331 = vlaneseq
        %v332 = vshrl.u32 %v331, 7
        %v333 = vsub.s32 0, %v332
        %v334 = vrot.slane %v329, %v333
        %v344 = vunpack.c.l.b16 %v319
        %v345 = vunpack.c.l.b16 %v320
        %v346 = vunpack.c.l.b16 %v321
        %v347 = vunpack.c.l.b16 %v322
        %v348 = vunpack.c.l.b16 %v323
        %v349 = vunpack.c.l.b16 %v324
        %v350 = vunpack.c.l.b16 %v325
        %v351 = vunpack.c.l.b16 %v326
        %v352 = vpack.c.b16 %v345, %v344
        %v353 = vpack.c.b16 %v347, %v346
        %v354 = vpack.c.b16 %v349, %v348
        %v355 = vpack.c.b16 %v351, %v350
        %v358 = vunpack.c.l.b16 %v327
        %v359 = vunpack.c.l.b16 %v328
        %v360 = vpack.c.b16 %v359, %v358
        %vm362 = vcmask 130048
        %v364 = vsel %vm362, %v352, 0
        %v367 = vsel %vm362, %v353, 0
        %v370 = vsel %vm362, %v354, 0
        %v373 = vsel %vm362, %v355, 0
        %375 = vmatprep.subr.bf16.mxu0 0
        %376 = vmatpush1.bf16.msra.mxu0 %v360
        %377 = vmatprep.subr.bf16.mxu0 0
        %378 = vmatpush1.bf16.msra.mxu0 0
        %379 = vmatprep.subr.bf16.mxu0 0
        %380 = vmatpush1.bf16.msra.mxu0 0
        %381 = vmatprep.subr.bf16.mxu0 0
        %382 = vmatpush1.bf16.msra.mxu0 0
        %383 = vmatprep.subr.bf16.mxu0 0
        %384 = vmatpush1.bf16.msra.mxu0 0
        %385 = vmatprep.subr.bf16.mxu0 0
        %386 = vmatpush1.bf16.msra.mxu0 0
        %387 = vmatprep.subr.bf16.mxu0 0
        %388 = vmatpush1.bf16.msra.mxu0 0
        %389 = vmatprep.subr.bf16.mxu0 0
        %390 = vmatpush1.bf16.msra.mxu0 0
        %391 = vmatprep.subr.bf16.mxu0 0
        %392 = vmatpush1.bf16.msra.mxu0 0
        %393 = vmatprep.subr.bf16.mxu0 0
        %394 = vmatpush1.bf16.msra.mxu0 0
        %395 = vmatprep.subr.bf16.mxu0 0
        %396 = vmatpush1.bf16.msra.mxu0 0
        %397 = vmatprep.subr.bf16.mxu0 0
        %398 = vmatpush1.bf16.msra.mxu0 0
        %399 = vmatprep.subr.bf16.mxu0 0
        %400 = vmatpush1.bf16.msra.mxu0 0
        %401 = vmatprep.subr.bf16.mxu0 0
        %402 = vmatpush1.bf16.msra.mxu0 0
        %403 = vmatprep.subr.bf16.mxu0 0
        %404 = vmatpush1.bf16.msra.mxu0 0
        %405 = vmatprep.subr.bf16.mxu0 0
        %406 = vmatpush1.bf16.msra.mxu0 0
        %407 = vmatprep.mubr.bf16.mxu0 0
        %408 = vmatmul.mubr.bf16.gmra.mrb[0].mxu0 %v364
        %v409 = vpop.f32.mrb[0].mxu0
        %v410 = vadd.f32 %v334, %v409
        %v411 = vpop.f32.mrb[0].mxu0
        %v412 = vpop.f32.mrb[0].mxu0
        %v413 = vadd.f32 %v334, %v412
        %v414 = vpop.f32.mrb[0].mxu0
        %415 = vmatprep.mubr.bf16.mxu0 0
        %416 = vmatmul.mubr.bf16.gmra.mrb[0].mxu0 %v367
        %v417 = vpop.f32.mrb[0].mxu0
        %v418 = vadd.f32 %v334, %v417
        %v419 = vpop.f32.mrb[0].mxu0
        %v420 = vpop.f32.mrb[0].mxu0
        %v421 = vadd.f32 %v334, %v420
        %v422 = vpop.f32.mrb[0].mxu0
        %423 = vmatprep.mubr.bf16.mxu0 0
        %424 = vmatmul.mubr.bf16.gmra.mrb[0].mxu0 %v370
        %v425 = vpop.f32.mrb[0].mxu0
        %v426 = vadd.f32 %v334, %v425
        %v427 = vpop.f32.mrb[0].mxu0
        %v428 = vpop.f32.mrb[0].mxu0
        %v429 = vadd.f32 %v334, %v428
        %v430 = vpop.f32.mrb[0].mxu0
        %431 = vmatprep.mubr.bf16.mxu0 0
        %432 = vmatmul.mubr.bf16.gmra.mrb[0].mxu0 %v373
        %v433 = vpop.f32.mrb[0].mxu0
        %v434 = vadd.f32 %v334, %v433
        %v435 = vpop.f32.mrb[0].mxu0
        %v436 = vpop.f32.mrb[0].mxu0
        %v437 = vadd.f32 %v334, %v436
        %v438 = vpop.f32.mrb[0].mxu0
        %439 = vdwg.mxu0
        %v440 = vmax.f32 %v410, 0.0
        %v441 = vmax.f32 %v413, 0.0
        %v442 = vmax.f32 %v418, 0.0
        %v443 = vmax.f32 %v421, 0.0
        %v444 = vmax.f32 %v426, 0.0
        %v445 = vmax.f32 %v429, 0.0
        %v446 = vmax.f32 %v434, 0.0
        %v447 = vmax.f32 %v437, 0.0
        %v448 = vpack.c.bf16 %v441, %v440
        %v449 = vpack.c.bf16 %v443, %v442
        %v450 = vpack.c.bf16 %v445, %v444
        %v451 = vpack.c.bf16 %v447, %v446
        %452 = vst.msk [vmem:[#allocation2 + $0x8] sm:$0xff] %vm314, %v448
        %453 = vst.msk [vmem:[#allocation2 + $0x10] sm:$0xff] %vm314, %v449
        %454 = vst.msk [vmem:[#allocation2 + $0x18] sm:$0xff] %vm314, %v450
        %455 = vst.msk [vmem:[#allocation2 + $0x20] sm:$0xff] %vm314, %v451
        %v456 = vlaneseq
        %v457 = vshrl.u32 %v456, 7
        %v458 = vadd.s32 %v457, 8
        %v459 = vadd.s32 %v457, 16
        %v460 = vadd.s32 %v457, 24
        %v461 = vadd.s32 %v457, 32
        %v462 = vadd.s32 %v457, 40
        %v463 = vadd.s32 %v457, 48
        %v464 = vadd.s32 %v457, 56
        %vm465 = vcmp.lt.s32.totalorder %v457, 0
        %v466 = vsub.s32 0, %v457
        %v467 = vsel %vm465, %v466, %v457
        %v468 = vshrl.u32 %v467, 3
        %v469 = vand.u32 %v467, 7
        %v470 = vsub.s32 0, %v469
        %v471 = vsel %vm465, %v470, %v469
        %vm472 = vcmp.lt.s32.totalorder %v458, 0
        %v473 = vsub.s32 0, %v458
        %v474 = vsel %vm472, %v473, %v458
        %v475 = vshrl.u32 %v474, 3
        %v476 = vand.u32 %v474, 7
        %v477 = vsub.s32 0, %v476
        %v478 = vsel %vm472, %v477, %v476
        %vm479 = vcmp.lt.s32.totalorder %v459, 0
        %v480 = vsub.s32 0, %v459
        %v481 = vsel %vm479, %v480, %v459
        %v482 = vshrl.u32 %v481, 3
        %v483 = vand.u32 %v481, 7
        %v484 = vsub.s32 0, %v483
        %v485 = vsel %vm479, %v484, %v483
        %vm486 = vcmp.lt.s32.totalorder %v460, 0
        %v487 = vsub.s32 0, %v460
        %v488 = vsel %vm486, %v487, %v460
        %v489 = vshrl.u32 %v488, 3
        %v490 = vand.u32 %v488, 7
        %v491 = vsub.s32 0, %v490
        %v492 = vsel %vm486, %v491, %v490
        %vm493 = vcmp.lt.s32.totalorder %v461, 0
        %v494 = vsub.s32 0, %v461
        %v495 = vsel %vm493, %v494, %v461
        %v496 = vshrl.u32 %v495, 3
        %v497 = vand.u32 %v495, 7
        %v498 = vsub.s32 0, %v497
        %v499 = vsel %vm493, %v498, %v497
        %vm500 = vcmp.lt.s32.totalorder %v462, 0
        %v501 = vsub.s32 0, %v462
        %v502 = vsel %vm500, %v501, %v462
        %v503 = vshrl.u32 %v502, 3
        %v504 = vand.u32 %v502, 7
        %v505 = vsub.s32 0, %v504
        %v506 = vsel %vm500, %v505, %v504
        %vm507 = vcmp.lt.s32.totalorder %v463, 0
        %v508 = vsub.s32 0, %v463
        %v509 = vsel %vm507, %v508, %v463
        %v510 = vshrl.u32 %v509, 3
        %v511 = vand.u32 %v509, 7
        %v512 = vsub.s32 0, %v511
        %v513 = vsel %vm507, %v512, %v511
        %vm514 = vcmp.lt.s32.totalorder %v464, 0
        %v515 = vsub.s32 0, %v464
        %v516 = vsel %vm514, %v515, %v464
        %v517 = vshrl.u32 %v516, 3
        %v518 = vand.u32 %v516, 7
        %v519 = vsub.s32 0, %v518
        %v520 = vsel %vm514, %v519, %v518
        %vm521 = vcmp.ne.s32.totalorder %v471, 0
        %vm522 = vcmp.ne.s32.totalorder %v478, 0
        %vm523 = vcmp.ne.s32.totalorder %v485, 0
        %vm524 = vcmp.ne.s32.totalorder %v492, 0
        %vm525 = vcmp.ne.s32.totalorder %v499, 0
        %vm526 = vcmp.ne.s32.totalorder %v506, 0
        %vm527 = vcmp.ne.s32.totalorder %v513, 0
        %vm528 = vcmp.ne.s32.totalorder %v520, 0
        %vm529 = vcmp.lt.s32.totalorder %v471, 0
        %vm530 = vcmp.lt.s32.totalorder %v478, 0
        %vm531 = vcmp.lt.s32.totalorder %v485, 0
        %vm532 = vcmp.lt.s32.totalorder %v492, 0
        %vm533 = vcmp.lt.s32.totalorder %v499, 0
        %vm534 = vcmp.lt.s32.totalorder %v506, 0
        %vm535 = vcmp.lt.s32.totalorder %v513, 0
        %vm536 = vcmp.lt.s32.totalorder %v520, 0
        %vm537 = vmand %vm529, %vm521
        %vm538 = vmand %vm530, %vm522
        %vm539 = vmand %vm531, %vm523
        %vm540 = vmand %vm532, %vm524
        %vm541 = vmand %vm533, %vm525
        %vm542 = vmand %vm534, %vm526
        %vm543 = vmand %vm535, %vm527
        %vm544 = vmand %vm536, %vm528
        %v545 = vadd.s32 %v471, 8
        %v546 = vadd.s32 %v478, 8
        %v547 = vadd.s32 %v485, 8
        %v548 = vadd.s32 %v492, 8
        %v549 = vadd.s32 %v499, 8
        %v550 = vadd.s32 %v506, 8
        %v551 = vadd.s32 %v513, 8
        %v552 = vadd.s32 %v520, 8
        %v553 = vsel %vm537, %v545, %v471
        %v554 = vsel %vm538, %v546, %v478
        %v555 = vsel %vm539, %v547, %v485
        %v556 = vsel %vm540, %v548, %v492
        %v557 = vsel %vm541, %v549, %v499
        %v558 = vsel %vm542, %v550, %v506
        %v559 = vsel %vm543, %v551, %v513
        %v560 = vsel %vm544, %v552, %v520
        %vm561 = vcmp.gt.s32.totalorder %v553, 0
        %vm562 = vcmp.gt.s32.totalorder %v554, 0
        %vm563 = vcmp.gt.s32.totalorder %v555, 0
        %vm564 = vcmp.gt.s32.totalorder %v556, 0
        %vm565 = vcmp.gt.s32.totalorder %v557, 0
        %vm566 = vcmp.gt.s32.totalorder %v558, 0
        %vm567 = vcmp.gt.s32.totalorder %v559, 0
        %vm568 = vcmp.gt.s32.totalorder %v560, 0
        %v569 = vsel %vm561, 1, 0
        %v570 = vsel %vm562, 1, 0
        %v571 = vsel %vm563, 1, 0
        %v572 = vsel %vm564, 1, 0
        %v573 = vsel %vm565, 1, 0
        %v574 = vsel %vm566, 1, 0
        %v575 = vsel %vm567, 1, 0
        %v576 = vsel %vm568, 1, 0
        %v577 = vcvt.s32.f32 %v569
        %v578 = vcvt.s32.f32 %v570
        %v579 = vcvt.s32.f32 %v571
        %v580 = vcvt.s32.f32 %v572
        %v581 = vcvt.s32.f32 %v573
        %v582 = vcvt.s32.f32 %v574
        %v583 = vcvt.s32.f32 %v575
        %v584 = vcvt.s32.f32 %v576
        %v585 = vpack.c.bf16 %v578, %v577
        %v586 = vpack.c.bf16 %v580, %v579
        %v587 = vpack.c.bf16 %v582, %v581
        %v588 = vpack.c.bf16 %v584, %v583
        %vm589 = vcmp.lt.s32.totalorder %v553, 7
        %vm590 = vcmp.lt.s32.totalorder %v554, 7
        %vm591 = vcmp.lt.s32.totalorder %v555, 7
        %vm592 = vcmp.lt.s32.totalorder %v556, 7
        %vm593 = vcmp.lt.s32.totalorder %v557, 7
        %vm594 = vcmp.lt.s32.totalorder %v558, 7
        %vm595 = vcmp.lt.s32.totalorder %v559, 7
        %vm596 = vcmp.lt.s32.totalorder %v560, 7
        %v597 = vsel %vm589, 1, 0
        %v598 = vsel %vm590, 1, 0
        %v599 = vsel %vm591, 1, 0
        %v600 = vsel %vm592, 1, 0
        %v601 = vsel %vm593, 1, 0
        %v602 = vsel %vm594, 1, 0
        %v603 = vsel %vm595, 1, 0
        %v604 = vsel %vm596, 1, 0
        %v605 = vcvt.s32.f32 %v597
        %v606 = vcvt.s32.f32 %v598
        %v607 = vcvt.s32.f32 %v599
        %v608 = vcvt.s32.f32 %v600
        %v609 = vcvt.s32.f32 %v601
        %v610 = vcvt.s32.f32 %v602
        %v611 = vcvt.s32.f32 %v603
        %v612 = vcvt.s32.f32 %v604
        %v613 = vpack.c.bf16 %v606, %v605
        %v614 = vpack.c.bf16 %v608, %v607
        %v615 = vpack.c.bf16 %v610, %v609
        %v616 = vpack.c.bf16 %v612, %v611
        %v617 = vld [vmem:[#allocation2] sm:$0xf8]
        %v618 = vld [vmem:[#allocation2 + $0x8] sm:$0xff]
        %v619 = vld [vmem:[#allocation2 + $0x10] sm:$0xff]
        %v620 = vld [vmem:[#allocation2 + $0x18] sm:$0xff]
        %v621 = vld [vmem:[#allocation2 + $0x20] sm:$0xf]
        %v622 = vld [vmem:[#allocation2] sm:$0x80]
        %v623 = vld [vmem:[#allocation2 + $0x20] sm:$0xff]
        %v624 = vld [vmem:[#allocation2 + $0x8] sm:$0xf8]
        %v625 = vld [vmem:[#allocation2 + $0x28] sm:$0xf]
        %vm631 = vcmask 1043456
        %v632 = vrot.slane %v622, 4
        %v633 = vrot.slane %v618, 4
        %v634 = vsel %vm631, %v632, %v633
        %v635 = vrot.slane %v619, 4
        %v636 = vsel %vm631, %v633, %v635
        %v637 = vrot.slane %v620, 4
        %v638 = vsel %vm631, %v635, %v637
        %v639 = vrot.slane %v623, 4
        %v640 = vsel %vm631, %v637, %v639
        %641 = vrot.lane.b32.xlu0 %v634, 4
        %v642 = vpop.permute.xlu0 %641
        %643 = vrot.lane.b32.xlu0 %v636, 4
        %v644 = vpop.permute.xlu0 %643
        %645 = vrot.lane.b32.xlu0 %v638, 4
        %v646 = vpop.permute.xlu0 %645
        %647 = vrot.lane.b32.xlu0 %v640, 4
        %v648 = vpop.permute.xlu0 %647
        %649 = vrot.lane.b32.xlu0 %v639, 4
        %v650 = vpop.permute.xlu0 %649
        %653 = vrot.lane.b32.xlu0 %v624, 8
        %v654 = vpop.permute.xlu0 %653
        %655 = vrot.lane.b32.xlu0 %v619, 8
        %v656 = vpop.permute.xlu0 %655
        %657 = vrot.lane.b32.xlu0 %v620, 8
        %v658 = vpop.permute.xlu0 %657
        %659 = vrot.lane.b32.xlu0 %v623, 8
        %v660 = vpop.permute.xlu0 %659
        %661 = vrot.lane.b32.xlu0 %v625, 8
        %v662 = vpop.permute.xlu0 %661
        %v665 = vsel %vm314, %v617, %v642
        %v668 = vsel %vm314, %v618, %v644
        %v671 = vsel %vm314, %v619, %v646
        %v674 = vsel %vm314, %v620, %v648
        %v677 = vsel %vm314, %v621, %v650
        %vm678 = vcmask 64512
        %v680 = vsel %vm678, %v665, %v654
        %v683 = vsel %vm678, %v668, %v656
        %v686 = vsel %vm678, %v671, %v658
        %v689 = vsel %vm678, %v674, %v660
        %v692 = vsel %vm678, %v677, %v662
        %vm694 = vsmask.f32 3328
        %v696 = vshrl.u32 %v585, 16
        %v698 = vrot.slane %v696, 4
        %v699 = vshll.u32 %v585, 16
        %v701 = vrot.slane %v699, 5
        %v702 = vor.u32 %v698, %v701
        %v704 = vshrl.u32 %v586, 16
        %v706 = vrot.slane %v704, 4
        %v707 = vshll.u32 %v586, 16
        %v709 = vrot.slane %v707, 5
        %v710 = vor.u32 %v706, %v709
        %v711 = vsel %vm694, %v702, %v710
        %v713 = vshrl.u32 %v587, 16
        %v715 = vrot.slane %v713, 4
        %v716 = vshll.u32 %v587, 16
        %v718 = vrot.slane %v716, 5
        %v719 = vor.u32 %v715, %v718
        %v720 = vsel %vm694, %v710, %v719
        %v722 = vshrl.u32 %v588, 16
        %v724 = vrot.slane %v722, 4
        %v725 = vshll.u32 %v588, 16
        %v727 = vrot.slane %v725, 5
        %v728 = vor.u32 %v724, %v727
        %v729 = vsel %vm694, %v719, %v728
        %v735 = vmul.bf16 %v680, %v702
        %v736 = vmul.bf16 %v683, %v711
        %v737 = vmul.bf16 %v686, %v720
        %v738 = vmul.bf16 %v689, %v729
        %v739 = vmul.bf16 %v692, %v728
        %v740 = vld [vmem:[%s3] sm:$0xf]
        %v741 = vld [vmem:[%s3 + $0x4] sm:$0x3]
        %v742 = vld [vmem:[#allocation2] sm:$0xf0]
        %v743 = vld [vmem:[#allocation2 + $0x8] sm:$0xf0]
        %744 = vrot.lane.b32.xlu0 %v633, 4
        %v745 = vpop.permute.xlu0 %744
        %747 = vrot.lane.b32.xlu0 %v743, 8
        %v748 = vpop.permute.xlu0 %747
        %v751 = vsel %vm314, %v742, %v745
        %v753 = vsel %vm678, %v751, %v748
        %s754 = scalar_lea.vmem %s3, 8
        %v755 = vld [vmem:[%s754] sm:$0xf]
        %v756 = vld [vmem:[%s754 + $0x4] sm:$0x3]
        %v762 = vrot.slane %v753, 4
        %v763 = vrot.slane %v683, 4
        %v764 = vsel %vm631, %v762, %v763
        %v765 = vrot.slane %v686, 4
        %v766 = vsel %vm631, %v763, %v765
        %v767 = vrot.slane %v689, 4
        %v768 = vsel %vm631, %v765, %v767
        %v769 = vrot.slane %v692, 4
        %v770 = vsel %vm631, %v767, %v769
        %v773 = vunpack.c.l.b16 %v755
        %v774 = vunpack.c.l.b16 %v756
        %v775 = vpack.c.b16 %v774, %v773
        %vm776 = vcmask 97280
        %v778 = vsel %vm776, %v764, 0
        %v781 = vsel %vm776, %v766, 0
        %v784 = vsel %vm776, %v768, 0
        %v787 = vsel %vm776, %v770, 0
        %vm789 = vcmask 1045504
        %v791 = vsel %vm789, %v775, 0
        %793 = vmatprep.subr.bf16.mxu0 0
        %794 = vmatpush1.bf16.msra.mxu0 %v791
        %795 = vmatprep.subr.bf16.mxu0 0
        %796 = vmatpush1.bf16.msra.mxu0 0
        %797 = vmatprep.subr.bf16.mxu0 0
        %798 = vmatpush1.bf16.msra.mxu0 0
        %799 = vmatprep.subr.bf16.mxu0 0
        %800 = vmatpush1.bf16.msra.mxu0 0
        %801 = vmatprep.subr.bf16.mxu0 0
        %802 = vmatpush1.bf16.msra.mxu0 0
        %803 = vmatprep.subr.bf16.mxu0 0
        %804 = vmatpush1.bf16.msra.mxu0 0
        %805 = vmatprep.subr.bf16.mxu0 0
        %806 = vmatpush1.bf16.msra.mxu0 0
        %807 = vmatprep.subr.bf16.mxu0 0
        %808 = vmatpush1.bf16.msra.mxu0 0
        %809 = vmatprep.subr.bf16.mxu0 0
        %810 = vmatpush1.bf16.msra.mxu0 0
        %811 = vmatprep.subr.bf16.mxu0 0
        %812 = vmatpush1.bf16.msra.mxu0 0
        %813 = vmatprep.subr.bf16.mxu0 0
        %814 = vmatpush1.bf16.msra.mxu0 0
        %815 = vmatprep.subr.bf16.mxu0 0
        %816 = vmatpush1.bf16.msra.mxu0 0
        %817 = vmatprep.subr.bf16.mxu0 0
        %818 = vmatpush1.bf16.msra.mxu0 0
        %819 = vmatprep.subr.bf16.mxu0 0
        %820 = vmatpush1.bf16.msra.mxu0 0
        %821 = vmatprep.subr.bf16.mxu0 0
        %822 = vmatpush1.bf16.msra.mxu0 0
        %823 = vmatprep.subr.bf16.mxu0 0
        %824 = vmatpush1.bf16.msra.mxu0 0
        %825 = vmatprep.mubr.bf16.mxu0 0
        %826 = vmatmul.mubr.bf16.gmra.mrb[0].mxu0 %v778
        %v827 = vpop.f32.mrb[0].mxu0
        %v828 = vadd.f32 0.0, %v827
        %v829 = vpop.f32.mrb[0].mxu0
        %v830 = vpop.f32.mrb[0].mxu0
        %v831 = vadd.f32 0.0, %v830
        %v832 = vpop.f32.mrb[0].mxu0
        %833 = vmatprep.mubr.bf16.mxu0 0
        %834 = vmatmul.mubr.bf16.gmra.mrb[0].mxu0 %v781
        %v835 = vpop.f32.mrb[0].mxu0
        %v836 = vadd.f32 0.0, %v835
        %v837 = vpop.f32.mrb[0].mxu0
        %v838 = vpop.f32.mrb[0].mxu0
        %v839 = vadd.f32 0.0, %v838
        %v840 = vpop.f32.mrb[0].mxu0
        %841 = vmatprep.mubr.bf16.mxu0 0
        %842 = vmatmul.mubr.bf16.gmra.mrb[0].mxu0 %v784
        %v843 = vpop.f32.mrb[0].mxu0
        %v844 = vadd.f32 0.0, %v843
        %v845 = vpop.f32.mrb[0].mxu0
        %v846 = vpop.f32.mrb[0].mxu0
        %v847 = vadd.f32 0.0, %v846
        %v848 = vpop.f32.mrb[0].mxu0
        %849 = vmatprep.mubr.bf16.mxu0 0
        %850 = vmatmul.mubr.bf16.gmra.mrb[0].mxu0 %v787
        %v851 = vpop.f32.mrb[0].mxu0
        %v852 = vadd.f32 0.0, %v851
        %v853 = vpop.f32.mrb[0].mxu0
        %v854 = vpop.f32.mrb[0].mxu0
        %v855 = vadd.f32 0.0, %v854
        %v856 = vpop.f32.mrb[0].mxu0
        %857 = vdwg.mxu0
        %vm858 = vsmask.f32 4352
        %v860 = vshrl.u32 %v735, 16
        %v862 = vrot.slane %v860, 3
        %v863 = vshll.u32 %v735, 16
        %v865 = vrot.slane %v863, 4
        %v866 = vor.u32 %v862, %v865
        %v868 = vshrl.u32 %v736, 16
        %v870 = vrot.slane %v868, 3
        %v871 = vshll.u32 %v736, 16
        %v873 = vrot.slane %v871, 4
        %v874 = vor.u32 %v870, %v873
        %v875 = vsel %vm858, %v866, %v874
        %v877 = vshrl.u32 %v737, 16
        %v879 = vrot.slane %v877, 3
        %v880 = vshll.u32 %v737, 16
        %v882 = vrot.slane %v880, 4
        %v883 = vor.u32 %v879, %v882
        %v884 = vsel %vm858, %v874, %v883
        %v886 = vshrl.u32 %v738, 16
        %v888 = vrot.slane %v886, 3
        %v889 = vshll.u32 %v738, 16
        %v891 = vrot.slane %v889, 4
        %v892 = vor.u32 %v888, %v891
        %v893 = vsel %vm858, %v883, %v892
        %v895 = vshrl.u32 %v739, 16
        %v897 = vrot.slane %v895, 3
        %v898 = vshll.u32 %v739, 16
        %v900 = vrot.slane %v898, 4
        %v901 = vor.u32 %v897, %v900
        %v902 = vsel %vm858, %v892, %v901
        %v905 = vunpack.c.l.b16 %v740
        %v906 = vunpack.c.l.b16 %v741
        %v907 = vpack.c.b16 %v906, %v905
        %v909 = vsel %vm776, %v875, 0
        %v912 = vsel %vm776, %v884, 0
        %v915 = vsel %vm776, %v893, 0
        %v918 = vsel %vm776, %v902, 0
        %v921 = vsel %vm789, %v907, 0
        %923 = vmatprep.subr.bf16.mxu0 0
        %924 = vmatpush1.bf16.msra.mxu0 %v921
        %925 = vmatprep.subr.bf16.mxu0 0
        %926 = vmatpush1.bf16.msra.mxu0 0
        %927 = vmatprep.subr.bf16.mxu0 0
        %928 = vmatpush1.bf16.msra.mxu0 0
        %929 = vmatprep.subr.bf16.mxu0 0
        %930 = vmatpush1.bf16.msra.mxu0 0
        %931 = vmatprep.subr.bf16.mxu0 0
        %932 = vmatpush1.bf16.msra.mxu0 0
        %933 = vmatprep.subr.bf16.mxu0 0
        %934 = vmatpush1.bf16.msra.mxu0 0
        %935 = vmatprep.subr.bf16.mxu0 0
        %936 = vmatpush1.bf16.msra.mxu0 0
        %937 = vmatprep.subr.bf16.mxu0 0
        %938 = vmatpush1.bf16.msra.mxu0 0
        %939 = vmatprep.subr.bf16.mxu0 0
        %940 = vmatpush1.bf16.msra.mxu0 0
        %941 = vmatprep.subr.bf16.mxu0 0
        %942 = vmatpush1.bf16.msra.mxu0 0
        %943 = vmatprep.subr.bf16.mxu0 0
        %944 = vmatpush1.bf16.msra.mxu0 0
        %945 = vmatprep.subr.bf16.mxu0 0
        %946 = vmatpush1.bf16.msra.mxu0 0
        %947 = vmatprep.subr.bf16.mxu0 0
        %948 = vmatpush1.bf16.msra.mxu0 0
        %949 = vmatprep.subr.bf16.mxu0 0
        %950 = vmatpush1.bf16.msra.mxu0 0
        %951 = vmatprep.subr.bf16.mxu0 0
        %952 = vmatpush1.bf16.msra.mxu0 0
        %953 = vmatprep.subr.bf16.mxu0 0
        %954 = vmatpush1.bf16.msra.mxu0 0
        %955 = vmatprep.mubr.bf16.mxu0 0
        %956 = vmatmul.mubr.bf16.gmra.mrb[0].mxu0 %v909
        %v957 = vpop.f32.mrb[0].mxu0
        %v958 = vadd.f32 %v828, %v957
        %v959 = vpop.f32.mrb[0].mxu0
        %v960 = vpop.f32.mrb[0].mxu0
        %v961 = vadd.f32 %v831, %v960
        %v962 = vpop.f32.mrb[0].mxu0
        %963 = vmatprep.mubr.bf16.mxu0 0
        %964 = vmatmul.mubr.bf16.gmra.mrb[0].mxu0 %v912
        %v965 = vpop.f32.mrb[0].mxu0
        %v966 = vadd.f32 %v836, %v965
        %v967 = vpop.f32.mrb[0].mxu0
        %v968 = vpop.f32.mrb[0].mxu0
        %v969 = vadd.f32 %v839, %v968
        %v970 = vpop.f32.mrb[0].mxu0
        %971 = vmatprep.mubr.bf16.mxu0 0
        %972 = vmatmul.mubr.bf16.gmra.mrb[0].mxu0 %v915
        %v973 = vpop.f32.mrb[0].mxu0
        %v974 = vadd.f32 %v844, %v973
        %v975 = vpop.f32.mrb[0].mxu0
        %v976 = vpop.f32.mrb[0].mxu0
        %v977 = vadd.f32 %v847, %v976
        %v978 = vpop.f32.mrb[0].mxu0
        %979 = vmatprep.mubr.bf16.mxu0 0
        %980 = vmatmul.mubr.bf16.gmra.mrb[0].mxu0 %v918
        %v981 = vpop.f32.mrb[0].mxu0
        %v982 = vadd.f32 %v852, %v981
        %v983 = vpop.f32.mrb[0].mxu0
        %v984 = vpop.f32.mrb[0].mxu0
        %v985 = vadd.f32 %v855, %v984
        %v986 = vpop.f32.mrb[0].mxu0
        %987 = vdwg.mxu0
        %v988 = vld [vmem:[#allocation2 + $0x20] sm:$0x1f]
        %v989 = vld [vmem:[#allocation2 + $0x8] sm:$0xff]
        %v990 = vld [vmem:[#allocation2 + $0x28] sm:$0x1]
        %v991 = vld [vmem:[#allocation2 + $0x28] sm:$0x1f]
        %v994 = vrot.slane %v989, 4
        %v995 = vsel %vm631, %v994, %v635
        %v996 = vrot.slane %v990, 4
        %v997 = vsel %vm631, %v639, %v996
        %998 = vrot.lane.b32.xlu0 %v994, 4
        %v999 = vpop.permute.xlu0 %998
        %1000 = vrot.lane.b32.xlu0 %v995, 4
        %v1001 = vpop.permute.xlu0 %1000
        %1002 = vrot.lane.b32.xlu0 %v997, 4
        %v1003 = vpop.permute.xlu0 %1002
        %1005 = vrot.lane.b32.xlu0 %v991, 8
        %v1006 = vpop.permute.xlu0 %1005
        %v1008 = vsel %vm314, %v742, %v999
        %v1010 = vsel %vm314, %v618, %v1001
        %v1013 = vsel %vm314, %v988, %v1003
        %v1014 = vsel %vm678, %v1008, %v748
        %v1016 = vsel %vm678, %v1010, %v656
        %v1019 = vsel %vm678, %v1013, %v1006
        %v1022 = vshrl.u32 %v613, 16
        %v1024 = vrot.slane %v1022, 3
        %v1025 = vshll.u32 %v613, 16
        %v1027 = vrot.slane %v1025, 4
        %v1028 = vor.u32 %v1024, %v1027
        %v1030 = vshrl.u32 %v614, 16
        %v1032 = vrot.slane %v1030, 3
        %v1033 = vshll.u32 %v614, 16
        %v1035 = vrot.slane %v1033, 4
        %v1036 = vor.u32 %v1032, %v1035
        %v1037 = vsel %vm858, %v1028, %v1036
        %v1039 = vshrl.u32 %v615, 16
        %v1041 = vrot.slane %v1039, 3
        %v1042 = vshll.u32 %v615, 16
        %v1044 = vrot.slane %v1042, 4
        %v1045 = vor.u32 %v1041, %v1044
        %v1046 = vsel %vm858, %v1036, %v1045
        %v1048 = vshrl.u32 %v616, 16
        %v1050 = vrot.slane %v1048, 3
        %v1051 = vshll.u32 %v616, 16
        %v1053 = vrot.slane %v1051, 4
        %v1054 = vor.u32 %v1050, %v1053
        %v1055 = vsel %vm858, %v1045, %v1054
        %v1061 = vmul.bf16 %v1014, %v1028
        %v1062 = vmul.bf16 %v1016, %v1037
        %v1063 = vmul.bf16 %v686, %v1046
        %v1064 = vmul.bf16 %v689, %v1055
        %v1065 = vmul.bf16 %v1019, %v1054
        %s1066 = scalar_lea.vmem %s3, 16
        %v1067 = vld [vmem:[%s1066] sm:$0xf]
        %v1068 = vld [vmem:[%s1066 + $0x4] sm:$0x3]
        %v1070 = vshrl.u32 %v1061, 16
        %v1072 = vrot.slane %v1070, 4
        %v1073 = vshll.u32 %v1061, 16
        %v1075 = vrot.slane %v1073, 5
        %v1076 = vor.u32 %v1072, %v1075
        %v1078 = vshrl.u32 %v1062, 16
        %v1080 = vrot.slane %v1078, 4
        %v1081 = vshll.u32 %v1062, 16
        %v1083 = vrot.slane %v1081, 5
        %v1084 = vor.u32 %v1080, %v1083
        %v1085 = vsel %vm694, %v1076, %v1084
        %v1087 = vshrl.u32 %v1063, 16
        %v1089 = vrot.slane %v1087, 4
        %v1090 = vshll.u32 %v1063, 16
        %v1092 = vrot.slane %v1090, 5
        %v1093 = vor.u32 %v1089, %v1092
        %v1094 = vsel %vm694, %v1084, %v1093
        %v1096 = vshrl.u32 %v1064, 16
        %v1098 = vrot.slane %v1096, 4
        %v1099 = vshll.u32 %v1064, 16
        %v1101 = vrot.slane %v1099, 5
        %v1102 = vor.u32 %v1098, %v1101
        %v1103 = vsel %vm694, %v1093, %v1102
        %v1105 = vshrl.u32 %v1065, 16
        %v1107 = vrot.slane %v1105, 4
        %v1108 = vshll.u32 %v1065, 16
        %v1110 = vrot.slane %v1108, 5
        %v1111 = vor.u32 %v1107, %v1110
        %v1112 = vsel %vm694, %v1102, %v1111
        %v1115 = vunpack.c.l.b16 %v1067
        %v1116 = vunpack.c.l.b16 %v1068
        %v1117 = vpack.c.b16 %v1116, %v1115
        %v1119 = vsel %vm776, %v1085, 0
        %v1122 = vsel %vm776, %v1094, 0
        %v1125 = vsel %vm776, %v1103, 0
        %v1128 = vsel %vm776, %v1112, 0
        %v1131 = vsel %vm789, %v1117, 0
        %1133 = vmatprep.subr.bf16.mxu0 0
        %1134 = vmatpush1.bf16.msra.mxu0 %v1131
        %1135 = vmatprep.subr.bf16.mxu0 0
        %1136 = vmatpush1.bf16.msra.mxu0 0
        %1137 = vmatprep.subr.bf16.mxu0 0
        %1138 = vmatpush1.bf16.msra.mxu0 0
        %1139 = vmatprep.subr.bf16.mxu0 0
        %1140 = vmatpush1.bf16.msra.mxu0 0
        %1141 = vmatprep.subr.bf16.mxu0 0
        %1142 = vmatpush1.bf16.msra.mxu0 0
        %1143 = vmatprep.subr.bf16.mxu0 0
        %1144 = vmatpush1.bf16.msra.mxu0 0
        %1145 = vmatprep.subr.bf16.mxu0 0
        %1146 = vmatpush1.bf16.msra.mxu0 0
        %1147 = vmatprep.subr.bf16.mxu0 0
        %1148 = vmatpush1.bf16.msra.mxu0 0
        %1149 = vmatprep.subr.bf16.mxu0 0
        %1150 = vmatpush1.bf16.msra.mxu0 0
        %1151 = vmatprep.subr.bf16.mxu0 0
        %1152 = vmatpush1.bf16.msra.mxu0 0
        %1153 = vmatprep.subr.bf16.mxu0 0
        %1154 = vmatpush1.bf16.msra.mxu0 0
        %1155 = vmatprep.subr.bf16.mxu0 0
        %1156 = vmatpush1.bf16.msra.mxu0 0
        %1157 = vmatprep.subr.bf16.mxu0 0
        %1158 = vmatpush1.bf16.msra.mxu0 0
        %1159 = vmatprep.subr.bf16.mxu0 0
        %1160 = vmatpush1.bf16.msra.mxu0 0
        %1161 = vmatprep.subr.bf16.mxu0 0
        %1162 = vmatpush1.bf16.msra.mxu0 0
        %1163 = vmatprep.subr.bf16.mxu0 0
        %1164 = vmatpush1.bf16.msra.mxu0 0
        %1165 = vmatprep.mubr.bf16.mxu0 0
        %1166 = vmatmul.mubr.bf16.gmra.mrb[0].mxu0 %v1119
        %v1167 = vpop.f32.mrb[0].mxu0
        %v1168 = vadd.f32 0.0, %v1167
        %v1169 = vpop.f32.mrb[0].mxu0
        %v1170 = vpop.f32.mrb[0].mxu0
        %v1171 = vadd.f32 0.0, %v1170
        %v1172 = vpop.f32.mrb[0].mxu0
        %1173 = vmatprep.mubr.bf16.mxu0 0
        %1174 = vmatmul.mubr.bf16.gmra.mrb[0].mxu0 %v1122
        %v1175 = vpop.f32.mrb[0].mxu0
        %v1176 = vadd.f32 0.0, %v1175
        %v1177 = vpop.f32.mrb[0].mxu0
        %v1178 = vpop.f32.mrb[0].mxu0
        %v1179 = vadd.f32 0.0, %v1178
        %v1180 = vpop.f32.mrb[0].mxu0
        %1181 = vmatprep.mubr.bf16.mxu0 0
        %1182 = vmatmul.mubr.bf16.gmra.mrb[0].mxu0 %v1125
        %v1183 = vpop.f32.mrb[0].mxu0
        %v1184 = vadd.f32 0.0, %v1183
        %v1185 = vpop.f32.mrb[0].mxu0
        %v1186 = vpop.f32.mrb[0].mxu0
        %v1187 = vadd.f32 0.0, %v1186
        %v1188 = vpop.f32.mrb[0].mxu0
        %1189 = vmatprep.mubr.bf16.mxu0 0
        %1190 = vmatmul.mubr.bf16.gmra.mrb[0].mxu0 %v1128
        %v1191 = vpop.f32.mrb[0].mxu0
        %v1192 = vadd.f32 0.0, %v1191
        %v1193 = vpop.f32.mrb[0].mxu0
        %v1194 = vpop.f32.mrb[0].mxu0
        %v1195 = vadd.f32 0.0, %v1194
        %v1196 = vpop.f32.mrb[0].mxu0
        %1197 = vdwg.mxu0
        %v1198 = vadd.f32 %v958, %v1168
        %v1199 = vadd.f32 %v961, %v1171
        %v1200 = vadd.f32 %v966, %v1176
        %v1201 = vadd.f32 %v969, %v1179
        %v1202 = vadd.f32 %v974, %v1184
        %v1203 = vadd.f32 %v977, %v1187
        %v1204 = vadd.f32 %v982, %v1192
        %v1205 = vadd.f32 %v985, %v1195
        %v1206 = vld [vmem:[%s4] sm:$0x1]
        %v1208 = vlaneseq
        %v1209 = vshrl.u32 %v1208, 7
        %v1210 = vsub.s32 0, %v1209
        %v1211 = vrot.slane %v1206, %v1210
        %v1213 = vadd.f32 %v1198, %v1211
        %v1214 = vadd.f32 %v1199, %v1211
        %v1215 = vadd.f32 %v1200, %v1211
        %v1216 = vadd.f32 %v1201, %v1211
        %v1217 = vadd.f32 %v1202, %v1211
        %v1218 = vadd.f32 %v1203, %v1211
        %v1219 = vadd.f32 %v1204, %v1211
        %v1220 = vadd.f32 %v1205, %v1211
        %v1221 = vmax.f32 %v1213, 0.0
        %v1222 = vmax.f32 %v1214, 0.0
        %v1223 = vmax.f32 %v1215, 0.0
        %v1224 = vmax.f32 %v1216, 0.0
        %v1225 = vmax.f32 %v1217, 0.0
        %v1226 = vmax.f32 %v1218, 0.0
        %v1227 = vmax.f32 %v1219, 0.0
        %v1228 = vmax.f32 %v1220, 0.0
        %v1229 = vpack.c.bf16 %v1222, %v1221
        %v1230 = vpack.c.bf16 %v1224, %v1223
        %v1231 = vpack.c.bf16 %v1226, %v1225
        %v1232 = vpack.c.bf16 %v1228, %v1227
        %v1233 = vld [vmem:[%s5] sm:$0x3]
        %v1234 = vld [vmem:[%s6] sm:$0x1]
        %v1236 = vlaneseq
        %v1237 = vshrl.u32 %v1236, 7
        %v1238 = vsub.s32 0, %v1237
        %v1239 = vrot.slane %v1234, %v1238
        %v1242 = vsel %vm314, %v1229, 0
        %v1245 = vsel %vm314, %v1230, 0
        %v1248 = vsel %vm314, %v1231, 0
        %v1251 = vsel %vm314, %v1232, 0
        %vm1253 = vcmask 1041408
        %v1255 = vsel %vm1253, %v1233, 0
        %1257 = vmatprep.subr.bf16.mxu0 0
        %1258 = vmatpush1.bf16.msra.mxu0 %v1255
        %1259 = vmatprep.subr.bf16.mxu0 0
        %1260 = vmatpush1.bf16.msra.mxu0 0
        %1261 = vmatprep.subr.bf16.mxu0 0
        %1262 = vmatpush1.bf16.msra.mxu0 0
        %1263 = vmatprep.subr.bf16.mxu0 0
        %1264 = vmatpush1.bf16.msra.mxu0 0
        %1265 = vmatprep.subr.bf16.mxu0 0
        %1266 = vmatpush1.bf16.msra.mxu0 0
        %1267 = vmatprep.subr.bf16.mxu0 0
        %1268 = vmatpush1.bf16.msra.mxu0 0
        %1269 = vmatprep.subr.bf16.mxu0 0
        %1270 = vmatpush1.bf16.msra.mxu0 0
        %1271 = vmatprep.subr.bf16.mxu0 0
        %1272 = vmatpush1.bf16.msra.mxu0 0
        %1273 = vmatprep.subr.bf16.mxu0 0
        %1274 = vmatpush1.bf16.msra.mxu0 0
        %1275 = vmatprep.subr.bf16.mxu0 0
        %1276 = vmatpush1.bf16.msra.mxu0 0
        %1277 = vmatprep.subr.bf16.mxu0 0
        %1278 = vmatpush1.bf16.msra.mxu0 0
        %1279 = vmatprep.subr.bf16.mxu0 0
        %1280 = vmatpush1.bf16.msra.mxu0 0
        %1281 = vmatprep.subr.bf16.mxu0 0
        %1282 = vmatpush1.bf16.msra.mxu0 0
        %1283 = vmatprep.subr.bf16.mxu0 0
        %1284 = vmatpush1.bf16.msra.mxu0 0
        %1285 = vmatprep.subr.bf16.mxu0 0
        %1286 = vmatpush1.bf16.msra.mxu0 0
        %1287 = vmatprep.subr.bf16.mxu0 0
        %1288 = vmatpush1.bf16.msra.mxu0 0
        %1289 = vmatprep.mubr.bf16.mxu0 0
        %1290 = vmatmul.mubr.bf16.gmra.mrb[0].mxu0 %v1242
        %v1291 = vpop.f32.mrb[0].mxu0
        %v1292 = vadd.f32 %v1239, %v1291
        %v1293 = vpop.f32.mrb[0].mxu0
        %v1294 = vpop.f32.mrb[0].mxu0
        %v1295 = vadd.f32 %v1239, %v1294
        %v1296 = vpop.f32.mrb[0].mxu0
        %1297 = vmatprep.mubr.bf16.mxu0 0
        %1298 = vmatmul.mubr.bf16.gmra.mrb[0].mxu0 %v1245
        %v1299 = vpop.f32.mrb[0].mxu0
        %v1300 = vadd.f32 %v1239, %v1299
        %v1301 = vpop.f32.mrb[0].mxu0
        %v1302 = vpop.f32.mrb[0].mxu0
        %v1303 = vadd.f32 %v1239, %v1302
        %v1304 = vpop.f32.mrb[0].mxu0
        %1305 = vmatprep.mubr.bf16.mxu0 0
        %1306 = vmatmul.mubr.bf16.gmra.mrb[0].mxu0 %v1248
        %v1307 = vpop.f32.mrb[0].mxu0
        %v1308 = vadd.f32 %v1239, %v1307
        %v1309 = vpop.f32.mrb[0].mxu0
        %v1310 = vpop.f32.mrb[0].mxu0
        %v1311 = vadd.f32 %v1239, %v1310
        %v1312 = vpop.f32.mrb[0].mxu0
        %1313 = vmatprep.mubr.bf16.mxu0 0
        %1314 = vmatmul.mubr.bf16.gmra.mrb[0].mxu0 %v1251
        %v1315 = vpop.f32.mrb[0].mxu0
        %v1316 = vadd.f32 %v1239, %v1315
        %v1317 = vpop.f32.mrb[0].mxu0
        %v1318 = vpop.f32.mrb[0].mxu0
        %v1319 = vadd.f32 %v1239, %v1318
        %v1320 = vpop.f32.mrb[0].mxu0
        %1321 = vdwg.mxu0
        %v1322 = vld [vmem:[%s318] sm:$0xf]
        %v1323 = vld [vmem:[%s318 + $0x4] sm:$0xf]
        %v1324 = vld [vmem:[%s318 + $0x8] sm:$0xf]
        %v1325 = vld [vmem:[%s318 + $0xc] sm:$0xf]
        %v1326 = vld [vmem:[%s318 + $0x10] sm:$0xf]
        %v1327 = vld [vmem:[%s318 + $0x14] sm:$0xf]
        %v1328 = vld [vmem:[%s318 + $0x18] sm:$0xf]
        %v1329 = vld [vmem:[%s318 + $0x1c] sm:$0xf]
        %v1330 = vunpack.c.l.bf16 %v1322
        %v1331 = vunpack.c.l.bf16 %v1323
        %v1332 = vunpack.c.l.bf16 %v1324
        %v1333 = vunpack.c.l.bf16 %v1325
        %v1334 = vunpack.c.l.bf16 %v1326
        %v1335 = vunpack.c.l.bf16 %v1327
        %v1336 = vunpack.c.l.bf16 %v1328
        %v1337 = vunpack.c.l.bf16 %v1329
        %v1338 = vadd.f32 %v1292, %v1330
        %v1339 = vadd.f32 %v1295, %v1331
        %v1340 = vadd.f32 %v1300, %v1332
        %v1341 = vadd.f32 %v1303, %v1333
        %v1342 = vadd.f32 %v1308, %v1334
        %v1343 = vadd.f32 %v1311, %v1335
        %v1344 = vadd.f32 %v1316, %v1336
        %v1345 = vadd.f32 %v1319, %v1337
        %v1346 = vmax.f32 %v1338, 0.0
        %v1347 = vmax.f32 %v1339, 0.0
        %v1348 = vmax.f32 %v1340, 0.0
        %v1349 = vmax.f32 %v1341, 0.0
        %v1350 = vmax.f32 %v1342, 0.0
        %v1351 = vmax.f32 %v1343, 0.0
        %v1352 = vmax.f32 %v1344, 0.0
        %v1353 = vmax.f32 %v1345, 0.0
        %v1354 = vpack.c.bf16 %v1347, %v1346
        %v1355 = vpack.c.bf16 %v1349, %v1348
        %v1356 = vpack.c.bf16 %v1351, %v1350
        %v1357 = vpack.c.bf16 %v1353, %v1352
        %v1362 = vunpack.c.l.b16 %v1354
        %v1363 = vunpack.c.h.b16 %v1354
        %v1364 = vunpack.c.l.b16 %v1355
        %v1365 = vunpack.c.h.b16 %v1355
        %v1366 = vunpack.c.l.b16 %v1356
        %v1367 = vunpack.c.h.b16 %v1356
        %v1368 = vunpack.c.l.b16 %v1357
        %v1369 = vunpack.c.h.b16 %v1357
        %v1370 = vpack.c.b16 %v1362, %v1362
        %v1371 = vpack.c.b16 %v1363, %v1363
        %v1372 = vpack.c.b16 %v1364, %v1364
        %v1373 = vpack.c.b16 %v1365, %v1365
        %v1374 = vpack.c.b16 %v1366, %v1366
        %v1375 = vpack.c.b16 %v1367, %v1367
        %v1376 = vpack.c.b16 %v1368, %v1368
        %v1377 = vpack.c.b16 %v1369, %v1369
        %vm1386 = vcmask 125952
        %1387 = vst.msk [vmem:[%s310] sm:$0xf] %vm1386, %v1370
        %1388 = vst.msk [vmem:[%s310 + $0x4] sm:$0xf] %vm1386, %v1371
        %1389 = vst.msk [vmem:[%s310 + $0x8] sm:$0xf] %vm1386, %v1372
        %1390 = vst.msk [vmem:[%s310 + $0xc] sm:$0xf] %vm1386, %v1373
        %1391 = vst.msk [vmem:[%s310 + $0x10] sm:$0xf] %vm1386, %v1374
        %1392 = vst.msk [vmem:[%s310 + $0x14] sm:$0xf] %vm1386, %v1375
        %1393 = vst.msk [vmem:[%s310 + $0x18] sm:$0xf] %vm1386, %v1376
        %1394 = vst.msk [vmem:[%s310 + $0x1c] sm:$0xf] %vm1386, %v1377
        %s1395 = sand.u32 %s198, 1
        %s1396 = scalar_lea.sflag [#allocation5], %s1395
        %s1397 = sand.u32 %s198, 1
        %s1398 = smul.addr %s1397, 32
        %s1399 = scalar_lea.vmem [#allocation6], %s1398
        // Predicated region
        $region53: #{tpu_custom_call.1} parent=47 // pred_check
          %p1400 = pneg %p208
        $region54: #{tpu_custom_call.1} parent=47 // pred_check_branch
          %1402 = sbr.rel (%p1400) target = $region56
        $region55: #{tpu_custom_call.1} parent=47 // pred_region
          %s1403 = smul.u32 8, %s29
          %s1405 = ssub.s32 512, 512
          %1406 = vsyncadd %s1396, %s1405
          %s1407 = smul.addr %s28, 8
          %s1408 = sadd.s32 %s1403, %s1407
          %s1409 = smul.addr %s1408, 64
          %s1410 = scalar_lea.hbm %s7, %s1409
          %s1411 = sshll.u32 %s1399, 4
          %s1412 = int_to_ptr.vmem [resolvable:$true] %s1411
          %1417 = dma.vmem_to_hbm [thread:$0]  %s1412, 512, %s1410, %s1396, 64, 64, 4
        $region56: #{tpu_custom_call.1} parent=47 // pred_fallthru
          _
      $region48: #{tpu_custom_call.1} parent=5 // pred_fallthru
        _
      %p1418 = scmp.le.s32.totalorder 2, %s19
      // Predicated region
      $region57: #{tpu_custom_call.1} parent=5 // pred_check
        %p1419 = pneg %p1418
      $region58: #{tpu_custom_call.1} parent=5 // pred_check_branch
        %1421 = sbr.rel (%p1419) target = $region60
      $region59: #{tpu_custom_call.1} parent=5 // pred_region
        %s1422 = ssub.s32 %s19, 2
        // Predicated region
        $region61: #{tpu_custom_call.1} parent=59 // pred_check
          %p1423 = pneg %p214
        $region62: #{tpu_custom_call.1} parent=59 // pred_check_branch
          %1425 = sbr.rel (%p1423) target = $region64
        $region63: #{tpu_custom_call.1} parent=59 // pred_region
          %s1426 = sand.u32 %s199, 1
          %s1427 = scalar_lea.sflag [#allocation5], %s1426
          %s1428 = sand.u32 %s199, 1
          %s1429 = smul.addr %s1428, 32
          %s1430 = scalar_lea.vmem [#allocation6], %s1429
          %1431 = dma.done %s1427, 512
        $region64: #{tpu_custom_call.1} parent=59 // pred_fallthru
          _
      $region60: #{tpu_custom_call.1} parent=5 // pred_fallthru
        _
    $region6: #{tpu_custom_call.1} parent=1 // loop_footer
      %s23 = sadd.s32 1, %s19
    $region7: #{tpu_custom_call.1} parent=1 // loop_footer_branch
      %18 = sbr.rel target = $region3
    $region8: #{tpu_custom_call.1} parent=1 // loop_exit
      _
    %1432 = vsyncpa [#allocation4], 1
    %s1433 = scalar_lea.sflag [#allocation4], 1
    %1434 = vsyncpa %s1433, 1
    %1435 = vsyncpa [#allocation5], 1
    %s1436 = scalar_lea.sflag [#allocation5], 1
    %1437 = vsyncpa %s1436, 1

</llo_original>
